<compile_context>
chip_gen: v7x
topology: tpu7x:2x2x1
jax: 0.10.0
libtpu: 0.0.40
codegen_flags: <defaults>
</compile_context>

<pallas_src>
import functools

import jax
import jax.numpy as jnp
import numpy as np
from jax import lax
from jax.experimental import pallas as pl
from jax.experimental.pallas import tpu as pltpu


def _depthwise_res_kernel(H, W, n_sub, dw_dtype,
                          x_ref, w1_ref, w3_ref, pg_ref, pc_ref, out_ref):
    """One column-tile (a group of whole images, possibly lane-padded) per step.

    x_ref  : (Cin, TILE)  f32   TILE = images_per_block * H * W (+ lane pad)
    w1_ref : (G, Cin)     bf16  pointwise expand weight (BN scale folded in)
    w3_ref : (Cout, G)    bf16  pointwise project weight (BN scale folded in)
    pg_ref : (G, 13)      f32   [9 dw taps (s2-folded) | b1 | a1 | b2 | a2]
    pc_ref : (Cout, 1)    f32   [b3]
    out_ref: (Cout, TILE)
    """
    HW = H * W
    TILE = x_ref.shape[1]
    SUB = TILE // n_sub

    pg = pg_ref[...]                                  # (G, 13)
    taps = pg[:, 0:9].astype(dw_dtype)                # BN scale already folded
    b1 = pg[:, 9:10].astype(dw_dtype)
    a1 = pg[:, 10:11].astype(dw_dtype)
    b2 = pg[:, 11:12].astype(dw_dtype)
    a2 = pg[:, 12:13].astype(dw_dtype)
    b3 = pc_ref[:, 0:1]                               # (Cout, 1) f32

    # Boundary masks (hoisted: identical for every sub-chunk, since each chunk
    # holds whole images).  Padding lanes at the end of a block only ever feed
    # *masked* taps of real lanes, so wrap-around rolls stay correct.
    q = lax.broadcasted_iota(jnp.int32, (1, SUB), 1) % HW
    col = q % W
    m_top = (q >= W).astype(dw_dtype)                 # row h-1 exists
    m_bot = (q < HW - W).astype(dw_dtype)             # row h+1 exists
    m_left = (col >= 1).astype(dw_dtype)              # col w-1 exists
    m_right = (col < W - 1).astype(dw_dtype)          # col w+1 exists
    masks = {}
    for oi in (-1, 0, 1):
        for oj in (-1, 0, 1):
            m = None
            if oi == -1:
                m = m_top
            elif oi == 1:
                m = m_bot
            if oj == -1:
                m = m_left if m is None else m * m_left
            elif oj == 1:
                m = m_right if m is None else m * m_right
            masks[(oi, oj)] = m

    # Static unroll over lane sub-chunks: independent chunks let the LLO
    # scheduler overlap the MXU matmuls of chunk c+1 with the VALU-bound
    # depthwise work of chunk c.
    for c in range(n_sub):
        sl = pl.ds(c * SUB, SUB)
        x = x_ref[:, sl]                              # (Cin, SUB) f32 (residual)

        # ---- pointwise conv Cin -> G (MXU, bf16 operands, f32 accum) ----
        # BN scale folded into w1; bias + PReLU in dw_dtype.
        h1 = jnp.dot(w1_ref[...], x.astype(jnp.bfloat16),
                     preferred_element_type=jnp.float32).astype(dw_dtype)
        h1 = h1 + b1
        h1 = jnp.where(h1 >= 0, h1, a1 * h1)          # per-channel PReLU

        # ---- depthwise 3x3 conv, stride 1, pad 1: lane rolls + masks ----
        acc = h1 * taps[:, 4:5]                       # center tap: no roll/mask
        for oi in (-1, 0, 1):
            for oj in (-1, 0, 1):
                if oi == 0 and oj == 0:
                    continue
                k = oi * W + oj                       # static lane offset
                tap = pltpu.roll(h1, (-k) % SUB, axis=1)
                t = (oi + 1) * 3 + (oj + 1)
                acc = acc + (tap * masks[(oi, oj)]) * taps[:, t:t + 1]
        h2 = acc + b2
        h2 = jnp.where(h2 >= 0, h2, a2 * h2)          # per-channel PReLU

        # ---- pointwise conv G -> Cout (MXU) + bias + residual ----
        h3 = jnp.dot(w3_ref[...], h2.astype(jnp.bfloat16),
                     preferred_element_type=jnp.float32)
        out_ref[:, sl] = (h3 + b3 + x).astype(out_ref.dtype)


def _device_kind():
    try:
        return jax.devices()[0].device_kind.lower()
    except Exception:
        return ""


def depthwise_res_pallas_cl(x_cl, params, *, N, H, W):
    """Channels-on-sublane entry point.  x_cl: (Cin, N*H*W) f32.

    Use this directly when chaining blocks so the NCHW<->CL transposes happen
    once per model instead of once per block.
    """
    (w1, s1, b1, a1, wdw, s2, b2, a2, w3, s3, b3) = params
    Cin = x_cl.shape[0]
    G = w1.shape[0]
    Cout = w3.shape[0]
    assert Cout == Cin, "residual requires out_c == in_c"
    HW = H * W

    kind = _device_kind()
    is_v7 = "v7" in kind
    prefer_bf16_dw = ("v6" in kind) or is_v7          # v5e has no bf16 VALU

    # ---- fold BN scales into the conv weights (O(G) wrapper work) ----
    cvec = lambda v: v.reshape(-1, 1).astype(jnp.float32)
    w1k = (s1[:, None] * w1).astype(jnp.bfloat16)                 # (G, Cin)
    w3k = (s3[:, None] * w3).astype(jnp.bfloat16)                 # (Cout, G)
    taps = (s2[:, None] * wdw.reshape(G, 9)).astype(jnp.float32)  # (G, 9)
    pg = jnp.concatenate([taps, cvec(b1), cvec(a1), cvec(b2), cvec(a2)],
                         axis=1)                                  # (G, 13)
    pc = cvec(b3)                                                 # (Cout, 1)

    # ---- VMEM-aware tile sizing (per generation) ----
    vmem_phys = (64 << 20) if is_v7 else (128 << 20)
    budget = vmem_phys // 3
    t_bytes = 2 if prefer_bf16_dw else 4
    # double-buffered x/out blocks + ~5 (G, lanes) DW temporaries per lane
    bytes_per_lane = 2 * (Cin + Cout) * 4 + 5 * G * t_bytes
    nb = max(1, min(N, budget // max(1, HW * bytes_per_lane)))
    if N >= 2:
        nb = min(nb, N // 2)      # >=2 grid steps: pipelining + both v7x cores
    while N % nb:
        nb -= 1
    grid_n = N // nb

    # ---- lane alignment: pad each block's lane axis up to a multiple of 128
    # (no silent collapse to one giant block any more) ----
    lanes = nb * HW
    pad = (-lanes) % 128 if grid_n > 1 else 0
    tile = lanes + pad
    if pad:
        xb = x_cl.reshape(Cin, grid_n, lanes)
        xb = jnp.pad(xb, ((0, 0), (0, 0), (0, pad)))
        x_in = xb.reshape(Cin, grid_n * tile)
    else:
        x_in = x_cl

    # ---- in-kernel lane sub-chunks (whole images, lane-aligned) ----
    n_sub = 1
    if pad == 0:
        for d in (4, 2):
            if nb % d == 0 and ((nb // d) * HW) % 128 == 0:
                n_sub = d
                break

    def _run(dw_dtype):
        kernel = functools.partial(_depthwise_res_kernel, H, W, n_sub, dw_dtype)
        return pl.pallas_call(
            kernel,
            out_shape=jax.ShapeDtypeStruct((Cout, grid_n * tile), x_cl.dtype),
            grid=(grid_n,),
            in_specs=[
                pl.BlockSpec((Cin, tile), lambda i: (0, i)),
                pl.BlockSpec((G, Cin), lambda i: (0, 0)),
                pl.BlockSpec((Cout, G), lambda i: (0, 0)),
                pl.BlockSpec((G, 13), lambda i: (0, 0)),
                pl.BlockSpec((Cout, 1), lambda i: (0, 0)),
            ],
            out_specs=pl.BlockSpec((Cout, tile), lambda i: (0, i)),
            compiler_params=pltpu.CompilerParams(
                dimension_semantics=("parallel",),
                vmem_limit_bytes=min(vmem_phys - (16 << 20), 100 << 20)),
        )(x_in, w1k, w3k, pg, pc)

    if prefer_bf16_dw:
        try:
            out_flat = _run(jnp.bfloat16)
        except Exception:
            # Safety net (eager path only): fall back to the f32 depthwise
            # section if the packed-bf16 lowering is rejected on this chip.
            out_flat = _run(jnp.float32)
    else:
        out_flat = _run(jnp.float32)

    if pad:
        out_flat = (out_flat.reshape(Cout, grid_n, tile)[:, :, :lanes]
                    .reshape(Cout, N * HW))
    return out_flat


def depthwise_res_pallas(x_nchw, params):
    """x_nchw: (N, Cin, H, W) — PyTorch layout.  params: see make_params()."""
    N, Cin, H, W = x_nchw.shape
    # Per-call NCHW<->CL transposes; a block chain should use the _cl entry
    # point and transpose only once at model entry/exit.
    x_cl = jnp.transpose(x_nchw, (1, 0, 2, 3)).reshape(Cin, N * H * W)
    out_cl = depthwise_res_pallas_cl(x_cl, params, N=N, H=H, W=W)
    Cout = out_cl.shape[0]
    return jnp.transpose(out_cl.reshape(Cout, N, H, W), (1, 0, 2, 3))


def make_params(key, Cin, Cout, G):
    """Deterministic synthetic parameters. BatchNorm folded (eval mode)."""
    ks = jax.random.split(key, 8)

    def fold_bn(k, c):
        kg, kb, km, kv = jax.random.split(k, 4)
        gamma = 1.0 + 0.1 * jax.random.normal(kg, (c,), jnp.float32)
        beta = 0.1 * jax.random.normal(kb, (c,), jnp.float32)
        mean = 0.1 * jax.random.normal(km, (c,), jnp.float32)
        var = jnp.abs(1.0 + 0.1 * jax.random.normal(kv, (c,), jnp.float32))
        scale = gamma / jnp.sqrt(var + 1e-5)
        bias = beta - mean * scale
        return scale, bias

    w1 = jax.random.normal(ks[0], (G, Cin), jnp.float32) / jnp.sqrt(Cin)
    s1, b1 = fold_bn(ks[1], G)
    a1 = 0.25 * jnp.ones((G,), jnp.float32)            # PReLU default init

    wdw = jax.random.normal(ks[2], (G, 3, 3), jnp.float32) / 3.0
    s2, b2 = fold_bn(ks[3], G)
    a2 = 0.25 * jnp.ones((G,), jnp.float32)

    w3 = jax.random.normal(ks[4], (Cout, G), jnp.float32) / jnp.sqrt(G)
    s3, b3 = fold_bn(ks[5], Cout)

    return (w1, s1, b1, a1, wdw, s2, b2, a2, w3, s3, b3)


def depthwise_res_ref(x_nchw, params):
    """Pure-JAX NCHW reference (mirrors the PyTorch forward in eval mode)."""
    (w1, s1, b1, a1, wdw, s2, b2, a2, w3, s3, b3) = params
    G, Cin = w1.shape
    Cout = w3.shape[0]
    dn = ('NCHW', 'OIHW', 'NCHW')
    hi = lax.Precision.HIGHEST
    cvec = lambda v: v.reshape(1, -1, 1, 1)

    h = lax.conv_general_dilated(x_nchw, w1.reshape(G, Cin, 1, 1), (1, 1),
                                 'VALID', dimension_numbers=dn, precision=hi)
    h = h * cvec(s1) + cvec(b1)
    h = jnp.where(h >= 0, h, cvec(a1) * h)

    h = lax.conv_general_dilated(h, wdw.reshape(G, 1, 3, 3), (1, 1),
                                 ((1, 1), (1, 1)), dimension_numbers=dn,
                                 feature_group_count=G, precision=hi)
    h = h * cvec(s2) + cvec(b2)
    h = jnp.where(h >= 0, h, cvec(a2) * h)

    h = lax.conv_general_dilated(h, w3.reshape(Cout, G, 1, 1), (1, 1),
                                 'VALID', dimension_numbers=dn, precision=hi)
    h = h * cvec(s3) + cvec(b3)
    return h + x_nchw


if __name__ == "__main__":
    key = jax.random.PRNGKey(0)
    kx, kp = jax.random.split(key)

    # Small shapes: batch=2, in_c=out_c=16, H=W=16, groups=32 (DepthWiseRes
    # with kernel=(3,3), stride=1, padding=1, groups=32).
    N, C, H, W, G = 2, 16, 16, 16, 32

    x_nchw = jax.random.normal(kx, (N, C, H, W), jnp.float32)   # PyTorch layout
    params = make_params(kp, C, C, G)

    out = depthwise_res_pallas(x_nchw, params)
    out = jax.block_until_ready(out)

    ref = depthwise_res_ref(x_nchw, params)
    assert out.shape == (N, C, H, W)
    # Tolerance accounts for bf16 MXU operands (f32 accumulation) and the
    # bf16 depthwise section on v6e/v7x vs. the Precision.HIGHEST f32 reference.
    np.testing.assert_allclose(np.asarray(out), np.asarray(ref),
                               rtol=5e-2, atol=5e-2)
    print("KERNEL_OK")
</pallas_src>

<mosaic_0001>
module attributes {stable_mosaic.version = 11 : i64} {
  func.func @_depthwise_res_kernel(%arg0: i32, %arg1: memref<16x256xf32, #tpu.memory_space<vmem>>, %arg2: memref<32x16xbf16, #tpu.memory_space<vmem>>, %arg3: memref<16x32xbf16, #tpu.memory_space<vmem>>, %arg4: memref<32x13xf32, #tpu.memory_space<vmem>>, %arg5: memref<16x1xf32, #tpu.memory_space<vmem>>, %arg6: memref<16x256xf32, #tpu.memory_space<vmem>>) attributes {dimension_semantics = [#tpu.dimension_semantics<parallel>], iteration_bounds = array<i64: 2>, scalar_prefetch = 0 : i64, scratch_operands = 0 : i64, tpu.core_type = #tpu.core_type<tc>, window_params = [{transform_indices = @transform_0, window_bounds = array<i64: 16, 256>}, {pipeline_mode = #tpu.pipeline_mode<synchronous>, transform_indices = @transform_1, window_bounds = array<i64: 32, 16>}, {pipeline_mode = #tpu.pipeline_mode<synchronous>, transform_indices = @transform_2, window_bounds = array<i64: 16, 32>}, {pipeline_mode = #tpu.pipeline_mode<synchronous>, transform_indices = @transform_3, window_bounds = array<i64: 32, 13>}, {pipeline_mode = #tpu.pipeline_mode<synchronous>, transform_indices = @transform_4, window_bounds = array<i64: 16, 1>}, {transform_indices = @transform_5, window_bounds = array<i64: 16, 256>}]} {
    %c0 = arith.constant 0 : index
    %c0_0 = arith.constant 0 : index
    %0 = vector.load %arg4[%c0, %c0_0] : memref<32x13xf32, #tpu.memory_space<vmem>>, vector<32x13xf32>
    %1 = vector.extract_strided_slice %0 {offsets = [0, 0], sizes = [32, 9], strides = [1, 1]} : vector<32x13xf32> to vector<32x9xf32>
    %2 = vector.extract_strided_slice %0 {offsets = [0, 9], sizes = [32, 1], strides = [1, 1]} : vector<32x13xf32> to vector<32x1xf32>
    %3 = vector.extract_strided_slice %0 {offsets = [0, 10], sizes = [32, 1], strides = [1, 1]} : vector<32x13xf32> to vector<32x1xf32>
    %4 = vector.extract_strided_slice %0 {offsets = [0, 11], sizes = [32, 1], strides = [1, 1]} : vector<32x13xf32> to vector<32x1xf32>
    %5 = vector.extract_strided_slice %0 {offsets = [0, 12], sizes = [32, 1], strides = [1, 1]} : vector<32x13xf32> to vector<32x1xf32>
    %c0_1 = arith.constant 0 : index
    %c0_2 = arith.constant 0 : index
    %6 = vector.load %arg5[%c0_1, %c0_2] : memref<16x1xf32, #tpu.memory_space<vmem>>, vector<16x1xf32>
    %7 = tpu.iota {dimensions = array<i32: 1>} : vector<1x256xi32>
    %c256_i32 = arith.constant 256 : i32
    %c0_i32 = arith.constant 0 : i32
    %8 = arith.cmpi eq, %c256_i32, %c0_i32 : i32
    %c1_i32 = arith.constant 1 : i32
    %9 = arith.select %8, %c1_i32, %c256_i32 : i32
    %10 = vector.broadcast %9 : i32 to vector<1x256xi32>
    %11 = arith.remsi %7, %10 : vector<1x256xi32>
    %c0_i32_3 = arith.constant 0 : i32
    %12 = vector.broadcast %c0_i32_3 : i32 to vector<1x256xi32>
    %13 = arith.cmpi ne, %11, %12 : vector<1x256xi32>
    %c0_i32_4 = arith.constant 0 : i32
    %14 = vector.broadcast %c0_i32_4 : i32 to vector<1x256xi32>
    %15 = arith.cmpi slt, %11, %14 : vector<1x256xi32>
    %c0_i32_5 = arith.constant 0 : i32
    %16 = arith.cmpi slt, %9, %c0_i32_5 : i32
    %17 = vector.broadcast %16 : i1 to vector<1x256xi1>
    %18 = vector.broadcast %17 : vector<1x256xi1> to vector<1x256xi1>
    %19 = arith.xori %15, %18 : vector<1x256xi1>
    %20 = arith.andi %19, %13 : vector<1x256xi1>
    %21 = vector.broadcast %9 : i32 to vector<1x256xi32>
    %22 = arith.addi %11, %21 : vector<1x256xi32>
    %23 = arith.select %20, %22, %11 : vector<1x256xi1>, vector<1x256xi32>
    %c16_i32 = arith.constant 16 : i32
    %c0_i32_6 = arith.constant 0 : i32
    %24 = arith.cmpi eq, %c16_i32, %c0_i32_6 : i32
    %c1_i32_7 = arith.constant 1 : i32
    %25 = arith.select %24, %c1_i32_7, %c16_i32 : i32
    %26 = vector.broadcast %25 : i32 to vector<1x256xi32>
    %27 = arith.remsi %23, %26 : vector<1x256xi32>
    %c0_i32_8 = arith.constant 0 : i32
    %28 = vector.broadcast %c0_i32_8 : i32 to vector<1x256xi32>
    %29 = arith.cmpi ne, %27, %28 : vector<1x256xi32>
    %c0_i32_9 = arith.constant 0 : i32
    %30 = vector.broadcast %c0_i32_9 : i32 to vector<1x256xi32>
    %31 = arith.cmpi slt, %27, %30 : vector<1x256xi32>
    %c0_i32_10 = arith.constant 0 : i32
    %32 = arith.cmpi slt, %25, %c0_i32_10 : i32
    %33 = vector.broadcast %32 : i1 to vector<1x256xi1>
    %34 = vector.broadcast %33 : vector<1x256xi1> to vector<1x256xi1>
    %35 = arith.xori %31, %34 : vector<1x256xi1>
    %36 = arith.andi %35, %29 : vector<1x256xi1>
    %37 = vector.broadcast %25 : i32 to vector<1x256xi32>
    %38 = arith.addi %27, %37 : vector<1x256xi32>
    %39 = arith.select %36, %38, %27 : vector<1x256xi1>, vector<1x256xi32>
    %c16_i32_11 = arith.constant 16 : i32
    %40 = vector.broadcast %c16_i32_11 : i32 to vector<1x256xi32>
    %41 = arith.cmpi sge, %23, %40 : vector<1x256xi32>
    %42 = arith.extui %41 : vector<1x256xi1> to vector<1x256xi32>
    %43 = arith.sitofp %42 : vector<1x256xi32> to vector<1x256xf32>
    %c240_i32 = arith.constant 240 : i32
    %44 = vector.broadcast %c240_i32 : i32 to vector<1x256xi32>
    %45 = arith.cmpi slt, %23, %44 : vector<1x256xi32>
    %46 = arith.extui %45 : vector<1x256xi1> to vector<1x256xi32>
    %47 = arith.sitofp %46 : vector<1x256xi32> to vector<1x256xf32>
    %c1_i32_12 = arith.constant 1 : i32
    %48 = vector.broadcast %c1_i32_12 : i32 to vector<1x256xi32>
    %49 = arith.cmpi sge, %39, %48 : vector<1x256xi32>
    %50 = arith.extui %49 : vector<1x256xi1> to vector<1x256xi32>
    %51 = arith.sitofp %50 : vector<1x256xi32> to vector<1x256xf32>
    %c15_i32 = arith.constant 15 : i32
    %52 = vector.broadcast %c15_i32 : i32 to vector<1x256xi32>
    %53 = arith.cmpi slt, %39, %52 : vector<1x256xi32>
    %54 = arith.extui %53 : vector<1x256xi1> to vector<1x256xi32>
    %55 = arith.sitofp %54 : vector<1x256xi32> to vector<1x256xf32>
    %56 = arith.mulf %43, %51 : vector<1x256xf32>
    %57 = arith.mulf %43, %55 : vector<1x256xf32>
    %58 = arith.mulf %47, %51 : vector<1x256xf32>
    %59 = arith.mulf %47, %55 : vector<1x256xf32>
    %c0_13 = arith.constant 0 : index
    %c0_14 = arith.constant 0 : index
    %60 = vector.load %arg1[%c0_13, %c0_14] : memref<16x256xf32, #tpu.memory_space<vmem>>, vector<16x256xf32>
    %c0_15 = arith.constant 0 : index
    %c0_16 = arith.constant 0 : index
    %61 = vector.load %arg2[%c0_15, %c0_16] : memref<32x16xbf16, #tpu.memory_space<vmem>>, vector<32x16xbf16>
    %62 = arith.truncf %60 : vector<16x256xf32> to vector<16x256xbf16>
    %cst = arith.constant dense<0.000000e+00> : vector<32x256xf32>
    %63 = tpu.matmul %61, %62, %cst {dimension_numbers = #tpu.dot_dimension_numbers<[1], [0], [0], [1], [0, 0, 1, 1], [], []>} : vector<32x16xbf16>, vector<16x256xbf16>, vector<32x256xf32> -> vector<32x256xf32>
    %64 = vector.broadcast %2 : vector<32x1xf32> to vector<32x256xf32>
    %65 = arith.addf %63, %64 : vector<32x256xf32>
    %cst_17 = arith.constant 0.000000e+00 : f32
    %66 = vector.broadcast %cst_17 : f32 to vector<32x256xf32>
    %67 = arith.cmpf oge, %65, %66 : vector<32x256xf32>
    %68 = vector.broadcast %3 : vector<32x1xf32> to vector<32x256xf32>
    %69 = arith.mulf %68, %65 : vector<32x256xf32>
    %70 = arith.select %67, %65, %69 : vector<32x256xi1>, vector<32x256xf32>
    %71 = vector.extract_strided_slice %1 {offsets = [0, 4], sizes = [32, 1], strides = [1, 1]} : vector<32x9xf32> to vector<32x1xf32>
    %72 = vector.broadcast %71 : vector<32x1xf32> to vector<32x256xf32>
    %73 = arith.mulf %70, %72 : vector<32x256xf32>
    %c17_i32 = arith.constant 17 : i32
    %74 = tpu.dynamic_rotate %70 by %c17_i32 dim 1 : vector<32x256xf32>, i32 -> vector<32x256xf32>
    %75 = vector.broadcast %56 : vector<1x256xf32> to vector<32x256xf32>
    %76 = arith.mulf %74, %75 : vector<32x256xf32>
    %77 = vector.extract_strided_slice %1 {offsets = [0, 0], sizes = [32, 1], strides = [1, 1]} : vector<32x9xf32> to vector<32x1xf32>
    %78 = vector.broadcast %77 : vector<32x1xf32> to vector<32x256xf32>
    %79 = arith.mulf %76, %78 : vector<32x256xf32>
    %80 = arith.addf %73, %79 : vector<32x256xf32>
    %c16_i32_18 = arith.constant 16 : i32
    %81 = tpu.dynamic_rotate %70 by %c16_i32_18 dim 1 : vector<32x256xf32>, i32 -> vector<32x256xf32>
    %82 = vector.broadcast %43 : vector<1x256xf32> to vector<32x256xf32>
    %83 = arith.mulf %81, %82 : vector<32x256xf32>
    %84 = vector.extract_strided_slice %1 {offsets = [0, 1], sizes = [32, 1], strides = [1, 1]} : vector<32x9xf32> to vector<32x1xf32>
    %85 = vector.broadcast %84 : vector<32x1xf32> to vector<32x256xf32>
    %86 = arith.mulf %83, %85 : vector<32x256xf32>
    %87 = arith.addf %80, %86 : vector<32x256xf32>
    %c15_i32_19 = arith.constant 15 : i32
    %88 = tpu.dynamic_rotate %70 by %c15_i32_19 dim 1 : vector<32x256xf32>, i32 -> vector<32x256xf32>
    %89 = vector.broadcast %57 : vector<1x256xf32> to vector<32x256xf32>
    %90 = arith.mulf %88, %89 : vector<32x256xf32>
    %91 = vector.extract_strided_slice %1 {offsets = [0, 2], sizes = [32, 1], strides = [1, 1]} : vector<32x9xf32> to vector<32x1xf32>
    %92 = vector.broadcast %91 : vector<32x1xf32> to vector<32x256xf32>
    %93 = arith.mulf %90, %92 : vector<32x256xf32>
    %94 = arith.addf %87, %93 : vector<32x256xf32>
    %c1_i32_20 = arith.constant 1 : i32
    %95 = tpu.dynamic_rotate %70 by %c1_i32_20 dim 1 : vector<32x256xf32>, i32 -> vector<32x256xf32>
    %96 = vector.broadcast %51 : vector<1x256xf32> to vector<32x256xf32>
    %97 = arith.mulf %95, %96 : vector<32x256xf32>
    %98 = vector.extract_strided_slice %1 {offsets = [0, 3], sizes = [32, 1], strides = [1, 1]} : vector<32x9xf32> to vector<32x1xf32>
    %99 = vector.broadcast %98 : vector<32x1xf32> to vector<32x256xf32>
    %100 = arith.mulf %97, %99 : vector<32x256xf32>
    %101 = arith.addf %94, %100 : vector<32x256xf32>
    %c255_i32 = arith.constant 255 : i32
    %102 = tpu.dynamic_rotate %70 by %c255_i32 dim 1 : vector<32x256xf32>, i32 -> vector<32x256xf32>
    %103 = vector.broadcast %55 : vector<1x256xf32> to vector<32x256xf32>
    %104 = arith.mulf %102, %103 : vector<32x256xf32>
    %105 = vector.extract_strided_slice %1 {offsets = [0, 5], sizes = [32, 1], strides = [1, 1]} : vector<32x9xf32> to vector<32x1xf32>
    %106 = vector.broadcast %105 : vector<32x1xf32> to vector<32x256xf32>
    %107 = arith.mulf %104, %106 : vector<32x256xf32>
    %108 = arith.addf %101, %107 : vector<32x256xf32>
    %c241_i32 = arith.constant 241 : i32
    %109 = tpu.dynamic_rotate %70 by %c241_i32 dim 1 : vector<32x256xf32>, i32 -> vector<32x256xf32>
    %110 = vector.broadcast %58 : vector<1x256xf32> to vector<32x256xf32>
    %111 = arith.mulf %109, %110 : vector<32x256xf32>
    %112 = vector.extract_strided_slice %1 {offsets = [0, 6], sizes = [32, 1], strides = [1, 1]} : vector<32x9xf32> to vector<32x1xf32>
    %113 = vector.broadcast %112 : vector<32x1xf32> to vector<32x256xf32>
    %114 = arith.mulf %111, %113 : vector<32x256xf32>
    %115 = arith.addf %108, %114 : vector<32x256xf32>
    %c240_i32_21 = arith.constant 240 : i32
    %116 = tpu.dynamic_rotate %70 by %c240_i32_21 dim 1 : vector<32x256xf32>, i32 -> vector<32x256xf32>
    %117 = vector.broadcast %47 : vector<1x256xf32> to vector<32x256xf32>
    %118 = arith.mulf %116, %117 : vector<32x256xf32>
    %119 = vector.extract_strided_slice %1 {offsets = [0, 7], sizes = [32, 1], strides = [1, 1]} : vector<32x9xf32> to vector<32x1xf32>
    %120 = vector.broadcast %119 : vector<32x1xf32> to vector<32x256xf32>
    %121 = arith.mulf %118, %120 : vector<32x256xf32>
    %122 = arith.addf %115, %121 : vector<32x256xf32>
    %c239_i32 = arith.constant 239 : i32
    %123 = tpu.dynamic_rotate %70 by %c239_i32 dim 1 : vector<32x256xf32>, i32 -> vector<32x256xf32>
    %124 = vector.broadcast %59 : vector<1x256xf32> to vector<32x256xf32>
    %125 = arith.mulf %123, %124 : vector<32x256xf32>
    %126 = vector.extract_strided_slice %1 {offsets = [0, 8], sizes = [32, 1], strides = [1, 1]} : vector<32x9xf32> to vector<32x1xf32>
    %127 = vector.broadcast %126 : vector<32x1xf32> to vector<32x256xf32>
    %128 = arith.mulf %125, %127 : vector<32x256xf32>
    %129 = arith.addf %122, %128 : vector<32x256xf32>
    %130 = vector.broadcast %4 : vector<32x1xf32> to vector<32x256xf32>
    %131 = arith.addf %129, %130 : vector<32x256xf32>
    %cst_22 = arith.constant 0.000000e+00 : f32
    %132 = vector.broadcast %cst_22 : f32 to vector<32x256xf32>
    %133 = arith.cmpf oge, %131, %132 : vector<32x256xf32>
    %134 = vector.broadcast %5 : vector<32x1xf32> to vector<32x256xf32>
    %135 = arith.mulf %134, %131 : vector<32x256xf32>
    %136 = arith.select %133, %131, %135 : vector<32x256xi1>, vector<32x256xf32>
    %c0_23 = arith.constant 0 : index
    %c0_24 = arith.constant 0 : index
    %137 = vector.load %arg3[%c0_23, %c0_24] : memref<16x32xbf16, #tpu.memory_space<vmem>>, vector<16x32xbf16>
    %138 = arith.truncf %136 : vector<32x256xf32> to vector<32x256xbf16>
    %cst_25 = arith.constant dense<0.000000e+00> : vector<16x256xf32>
    %139 = tpu.matmul %137, %138, %cst_25 {dimension_numbers = #tpu.dot_dimension_numbers<[1], [0], [0], [1], [0, 0, 1, 1], [], []>} : vector<16x32xbf16>, vector<32x256xbf16>, vector<16x256xf32> -> vector<16x256xf32>
    %140 = vector.broadcast %6 : vector<16x1xf32> to vector<16x256xf32>
    %141 = arith.addf %139, %140 : vector<16x256xf32>
    %142 = arith.addf %141, %60 : vector<16x256xf32>
    %c0_26 = arith.constant 0 : index
    %c0_27 = arith.constant 0 : index
    %143 = vector.load %arg6[%c0_26, %c0_27] : memref<16x256xf32, #tpu.memory_space<vmem>>, vector<16x256xf32>
    tpu.vector_store %arg6[%c0_26, %c0_27], %142 {strides = array<i32>} : memref<16x256xf32, #tpu.memory_space<vmem>>, vector<16x256xf32>,
    return
  }
  func.func @transform_0(%arg0: i32) -> (i32, i32) {
    %c0_i32 = arith.constant 0 : i32
    %c0_i32_0 = arith.constant 0 : i32
    return %c0_i32, %arg0 : i32, i32
  }
  func.func @transform_1(%arg0: i32) -> (i32, i32) {
    %c0_i32 = arith.constant 0 : i32
    %c0_i32_0 = arith.constant 0 : i32
    %c0_i32_1 = arith.constant 0 : i32
    return %c0_i32, %c0_i32_0 : i32, i32
  }
  func.func @transform_2(%arg0: i32) -> (i32, i32) {
    %c0_i32 = arith.constant 0 : i32
    %c0_i32_0 = arith.constant 0 : i32
    %c0_i32_1 = arith.constant 0 : i32
    return %c0_i32, %c0_i32_0 : i32, i32
  }
  func.func @transform_3(%arg0: i32) -> (i32, i32) {
    %c0_i32 = arith.constant 0 : i32
    %c0_i32_0 = arith.constant 0 : i32
    %c0_i32_1 = arith.constant 0 : i32
    return %c0_i32, %c0_i32_0 : i32, i32
  }
  func.func @transform_4(%arg0: i32) -> (i32, i32) {
    %c0_i32 = arith.constant 0 : i32
    %c0_i32_0 = arith.constant 0 : i32
    %c0_i32_1 = arith.constant 0 : i32
    return %c0_i32, %c0_i32_0 : i32, i32
  }
  func.func @transform_5(%arg0: i32) -> (i32, i32) {
    %c0_i32 = arith.constant 0 : i32
    %c0_i32_0 = arith.constant 0 : i32
    return %c0_i32, %arg0 : i32, i32
  }
}

</mosaic_0001>

<llo_original>
// kernel: tpu_custom_call.1
$region0: #{tpu_custom_call.1}
  #allocation0 [shape = 'u32[]', space=smem, size = 0x4, offset = 0x4, fixed_abs, tag = 'smem constant byte address 0x4 - core index']
  #allocation1 [shape = 'u32[144,128]{1,0:T(1,128)}', space=vmem, size = 0x12000, scoped, tag = 'internal scratch']
  %s0 = inlined_call_operand.hbm [shape: f32[16,512], index: 0, kind: input, shape index: {}]
  %s1 = inlined_call_operand.hbm [shape: bf16[32,16], index: 1, kind: input, shape index: {}]
  %s2 = inlined_call_operand.hbm [shape: bf16[16,32], index: 2, kind: input, shape index: {}]
  %s3 = inlined_call_operand.hbm [shape: f32[32,13], index: 3, kind: input, shape index: {}]
  %s4 = inlined_call_operand.hbm [shape: f32[16,1], index: 4, kind: input, shape index: {}]
  %s5 = inlined_call_operand.hbm [shape: f32[16,512], index: 5, kind: output, shape index: {}]
  %s6 = sld [smem:[#allocation0]]
  $region73: #{tpu_custom_call.1} parent=0
    _
  %s8 = ssub.s32 1, %s6
  %s9 = scalar_select 0, %s8, %s6
  $region1: #{tpu_custom_call.1} parent=0
    #allocation2 [shape = 'u8[32768]{0}', space=vmem, size = 0x8000, scoped, tag = 'input window, operand 0']
    #allocation3 [shape = 's32[2]{0}', space=sflag, size = 0x8, scoped, tag = 'scoped memory for tpu_custom_call.1']
    #allocation4 [shape = 's32[2]{0}', space=sflag, size = 0x8, scoped, tag = 'scoped memory for tpu_custom_call.1']
    #allocation5 [shape = 'u8[8192]{0}', space=vmem, size = 0x2000, scoped, tag = 'input window, operand 1, single buffered']
    #allocation6 [shape = 's32[1]{0}', space=sflag, size = 0x4, scoped, tag = 'scoped memory for tpu_custom_call.1']
    #allocation7 [shape = 'u8[4096]{0}', space=vmem, size = 0x1000, scoped, tag = 'input window, operand 2, single buffered']
    #allocation8 [shape = 'u8[16384]{0}', space=vmem, size = 0x4000, scoped, tag = 'input window, operand 3, single buffered']
    #allocation9 [shape = 's32[1]{0}', space=sflag, size = 0x4, scoped, tag = 'scoped memory for tpu_custom_call.1']
    #allocation10 [shape = 'u8[8192]{0}', space=vmem, size = 0x2000, scoped, tag = 'input window, operand 4, single buffered']
    #allocation11 [shape = 'u8[32768]{0}', space=vmem, size = 0x8000, scoped, tag = 'output window, operand 0']
    %10 = vsyncpa [#allocation3], 0
    %s11 = scalar_lea.sflag [#allocation3], 1
    %12 = vsyncpa %s11, 0
    %13 = vsyncpa [#allocation6], 0
    %14 = vsyncpa [#allocation9], 0
    %15 = vsyncpa [#allocation4], 0
    %s16 = scalar_lea.sflag [#allocation4], 1
    %17 = vsyncpa %s16, 0
    loop: start=0, step=1, limit=4
    $region2: #{tpu_custom_call.1} parent=1 // loop_pre_header
      _
    $region3: #{tpu_custom_call.1} parent=1 // loop_header
      %s19 = sphi 0, %s23
      %p20 = scmp.ge.s32.totalorder %s19, 4
      %s29 = sphi 0, %s31
      %s32 = sphi 0, %s29
      %s33 = sphi 0, %s32
      %s49 = sphi 0, %s33
      %s53 = sphi 0, %s53
      %s55 = sphi 0, %s53
      %s56 = sphi 0, %s55
      %s70 = sphi 0, %s56
      %s74 = sphi 0, %s74
      %s76 = sphi 0, %s74
      %s77 = sphi 0, %s76
      %s91 = sphi 0, %s77
      %s95 = sphi 0, %s95
      %s97 = sphi 0, %s95
      %s98 = sphi 0, %s97
      %s112 = sphi 0, %s98
      %s116 = sphi 0, %s116
      %s118 = sphi 0, %s116
      %s119 = sphi 0, %s118
      %s133 = sphi 0, %s119
      %s139 = sphi 0, %s141
      %s142 = sphi 0, %s139
      %s143 = sphi 0, %s142
      %s159 = sphi 0, %s143
    $region4: #{tpu_custom_call.1} parent=1 // loop_header_branch
      %22 = sbr.rel (%p20) target = $region8
    $region5: #{tpu_custom_call.1} parent=1 // loop_body
      %s24 = ssub.s32 %s19, 1
      %s25 = ssub.s32 %s19, 2
      %s26 = sadd.s32 %s19, 1
      %s27 = ssub.s32 %s19, %s26
      %p28 = scmp.eq.s32.totalorder %s27, 0
      %s30 = sadd.s32 %s29, 1
      %s31 = scalar_select %p28, %s29, %s30
      %p34 = pneg %p28
      %p35 = scmp.eq.s32.totalorder %s19, 1
      %p36 = por %p34, %p35
      %p37 = scmp.ne.s32.totalorder %s29, %s32
      %p38 = scmp.eq.s32.totalorder %s19, 0
      %p39 = por %p37, %p38
      %p40 = scmp.ne.s32.totalorder %s29, %s32
      %p41 = scmp.eq.s32.totalorder %s24, 1
      %p42 = por %p40, %p41
      %p43 = scmp.ne.s32.totalorder %s32, %s33
      %p44 = scmp.eq.s32.totalorder %s24, 0
      %p45 = por %p43, %p44
      %p46 = scmp.ne.s32.totalorder %s32, %s33
      %p47 = scmp.eq.s32.totalorder %s25, 1
      %p48 = por %p46, %p47
      %p50 = scmp.ne.s32.totalorder %s33, %s49
      %p51 = scmp.eq.s32.totalorder %s25, 0
      %p52 = por %p50, %p51
      %s54 = sadd.s32 %s53, 1
      %p57 = scmp.eq.s32.totalorder %s19, 1
      %p58 = scmp.ne.s32.totalorder %s53, %s55
      %p59 = scmp.eq.s32.totalorder %s19, 0
      %p60 = por %p58, %p59
      %p61 = scmp.ne.s32.totalorder %s53, %s55
      %p62 = scmp.eq.s32.totalorder %s24, 1
      %p63 = por %p61, %p62
      %p64 = scmp.ne.s32.totalorder %s55, %s56
      %p65 = scmp.eq.s32.totalorder %s24, 0
      %p66 = por %p64, %p65
      %p67 = scmp.ne.s32.totalorder %s55, %s56
      %p68 = scmp.eq.s32.totalorder %s25, 1
      %p69 = por %p67, %p68
      %p71 = scmp.ne.s32.totalorder %s56, %s70
      %p72 = scmp.eq.s32.totalorder %s25, 0
      %p73 = por %p71, %p72
      %s75 = sadd.s32 %s74, 1
      %p78 = scmp.eq.s32.totalorder %s19, 1
      %p79 = scmp.ne.s32.totalorder %s74, %s76
      %p80 = scmp.eq.s32.totalorder %s19, 0
      %p81 = por %p79, %p80
      %p82 = scmp.ne.s32.totalorder %s74, %s76
      %p83 = scmp.eq.s32.totalorder %s24, 1
      %p84 = por %p82, %p83
      %p85 = scmp.ne.s32.totalorder %s76, %s77
      %p86 = scmp.eq.s32.totalorder %s24, 0
      %p87 = por %p85, %p86
      %p88 = scmp.ne.s32.totalorder %s76, %s77
      %p89 = scmp.eq.s32.totalorder %s25, 1
      %p90 = por %p88, %p89
      %p92 = scmp.ne.s32.totalorder %s77, %s91
      %p93 = scmp.eq.s32.totalorder %s25, 0
      %p94 = por %p92, %p93
      %s96 = sadd.s32 %s95, 1
      %p99 = scmp.eq.s32.totalorder %s19, 1
      %p100 = scmp.ne.s32.totalorder %s95, %s97
      %p101 = scmp.eq.s32.totalorder %s19, 0
      %p102 = por %p100, %p101
      %p103 = scmp.ne.s32.totalorder %s95, %s97
      %p104 = scmp.eq.s32.totalorder %s24, 1
      %p105 = por %p103, %p104
      %p106 = scmp.ne.s32.totalorder %s97, %s98
      %p107 = scmp.eq.s32.totalorder %s24, 0
      %p108 = por %p106, %p107
      %p109 = scmp.ne.s32.totalorder %s97, %s98
      %p110 = scmp.eq.s32.totalorder %s25, 1
      %p111 = por %p109, %p110
      %p113 = scmp.ne.s32.totalorder %s98, %s112
      %p114 = scmp.eq.s32.totalorder %s25, 0
      %p115 = por %p113, %p114
      %s117 = sadd.s32 %s116, 1
      %p120 = scmp.eq.s32.totalorder %s19, 1
      %p121 = scmp.ne.s32.totalorder %s116, %s118
      %p122 = scmp.eq.s32.totalorder %s19, 0
      %p123 = por %p121, %p122
      %p124 = scmp.ne.s32.totalorder %s116, %s118
      %p125 = scmp.eq.s32.totalorder %s24, 1
      %p126 = por %p124, %p125
      %p127 = scmp.ne.s32.totalorder %s118, %s119
      %p128 = scmp.eq.s32.totalorder %s24, 0
      %p129 = por %p127, %p128
      %p130 = scmp.ne.s32.totalorder %s118, %s119
      %p131 = scmp.eq.s32.totalorder %s25, 1
      %p132 = por %p130, %p131
      %p134 = scmp.ne.s32.totalorder %s119, %s133
      %p135 = scmp.eq.s32.totalorder %s25, 0
      %p136 = por %p134, %p135
      %s137 = ssub.s32 %s19, %s26
      %p138 = scmp.eq.s32.totalorder %s137, 0
      %s140 = sadd.s32 %s139, 1
      %s141 = scalar_select %p138, %s139, %s140
      %p144 = pneg %p138
      %p145 = scmp.eq.s32.totalorder %s19, 1
      %p146 = por %p144, %p145
      %p147 = scmp.ne.s32.totalorder %s139, %s142
      %p148 = scmp.eq.s32.totalorder %s19, 0
      %p149 = por %p147, %p148
      %p150 = scmp.ne.s32.totalorder %s139, %s142
      %p151 = scmp.eq.s32.totalorder %s24, 1
      %p152 = por %p150, %p151
      %p153 = scmp.ne.s32.totalorder %s142, %s143
      %p154 = scmp.eq.s32.totalorder %s24, 0
      %p155 = por %p153, %p154
      %p156 = scmp.ne.s32.totalorder %s142, %s143
      %p157 = scmp.eq.s32.totalorder %s25, 1
      %p158 = por %p156, %p157
      %p160 = scmp.ne.s32.totalorder %s143, %s159
      %p161 = scmp.eq.s32.totalorder %s25, 0
      %p162 = por %p160, %p161
      %p163 = scmp.le.s32.totalorder 1, %s19
      %p164 = scmp.lt.s32.totalorder %s19, 3
      %p165 = pnand %p163, %p164
      %p166 = pneg %p165
      // Predicated region
      $region9: #{tpu_custom_call.1} parent=5 // pred_check
        _
      $region10: #{tpu_custom_call.1} parent=5 // pred_check_branch
        %168 = sbr.rel (%p165) target = $region12
      $region11: #{tpu_custom_call.1} parent=5 // pred_region
        %s169 = ssub.s32 %s19, 1
        // Predicated region
        $region13: #{tpu_custom_call.1} parent=11 // pred_check
          %p170 = pneg %p66
        $region14: #{tpu_custom_call.1} parent=11 // pred_check_branch
          %172 = sbr.rel (%p170) target = $region16
        $region15: #{tpu_custom_call.1} parent=11 // pred_region
          %s174 = ssub.s32 256, 256
          %175 = vsyncadd [#allocation6], %s174
          %s176 = sshll.u32 [#allocation5], 4
          %s177 = int_to_ptr.vmem [resolvable:$true] %s176
          %182 = dma.hbm_to_vmem [thread:$0]  %s1, 256, %s177, [#allocation6], 64, 64, 4
        $region16: #{tpu_custom_call.1} parent=11 // pred_fallthru
          _
        // Predicated region
        $region17: #{tpu_custom_call.1} parent=11 // pred_check
          %p183 = pneg %p87
        $region18: #{tpu_custom_call.1} parent=11 // pred_check_branch
          %185 = sbr.rel (%p183) target = $region20
        $region19: #{tpu_custom_call.1} parent=11 // pred_region
          %s187 = ssub.s32 128, 128
          %188 = vsyncadd [#allocation6], %s187
          %s189 = sshll.u32 [#allocation7], 4
          %s190 = int_to_ptr.vmem [resolvable:$true] %s189
          %195 = dma.hbm_to_vmem [thread:$0]  %s2, 128, %s190, [#allocation6], 64, 64, 4
        $region20: #{tpu_custom_call.1} parent=11 // pred_fallthru
          _
        // Predicated region
        $region21: #{tpu_custom_call.1} parent=11 // pred_check
          %p196 = pneg %p108
        $region22: #{tpu_custom_call.1} parent=11 // pred_check_branch
          %198 = sbr.rel (%p196) target = $region24
        $region23: #{tpu_custom_call.1} parent=11 // pred_region
          %s200 = ssub.s32 512, 512
          %201 = vsyncadd [#allocation9], %s200
          %s202 = sshll.u32 [#allocation8], 4
          %s203 = int_to_ptr.vmem [resolvable:$true] %s202
          %208 = dma.hbm_to_vmem [thread:$0]  %s3, 512, %s203, [#allocation9], 128, 128, 8
        $region24: #{tpu_custom_call.1} parent=11 // pred_fallthru
          _
        // Predicated region
        $region25: #{tpu_custom_call.1} parent=11 // pred_check
          %p209 = pneg %p129
        $region26: #{tpu_custom_call.1} parent=11 // pred_check_branch
          %211 = sbr.rel (%p209) target = $region28
        $region27: #{tpu_custom_call.1} parent=11 // pred_region
          %s213 = ssub.s32 256, 256
          %214 = vsyncadd [#allocation9], %s213
          %s215 = sshll.u32 [#allocation10], 4
          %s216 = int_to_ptr.vmem [resolvable:$true] %s215
          %221 = dma.hbm_to_vmem [thread:$0]  %s4, 256, %s216, [#allocation9], 128, 128, 8
        $region28: #{tpu_custom_call.1} parent=11 // pred_fallthru
          _
      $region12: #{tpu_custom_call.1} parent=5 // pred_fallthru
        _
      %p222 = scmp.lt.s32.totalorder %s19, 2
      // Predicated region
      $region29: #{tpu_custom_call.1} parent=5 // pred_check
        %p223 = pneg %p222
      $region30: #{tpu_custom_call.1} parent=5 // pred_check_branch
        %225 = sbr.rel (%p223) target = $region32
      $region31: #{tpu_custom_call.1} parent=5 // pred_region
        // Predicated region
        $region33: #{tpu_custom_call.1} parent=31 // pred_check
          %p226 = pneg %p39
        $region34: #{tpu_custom_call.1} parent=31 // pred_check_branch
          %228 = sbr.rel (%p226) target = $region36
        $region35: #{tpu_custom_call.1} parent=31 // pred_region
          %s229 = sand.u32 %s29, 1
          %s230 = scalar_lea.sflag [#allocation3], %s229
          %s231 = sand.u32 %s29, 1
          %s232 = smul.addr %s231, 32
          %s233 = scalar_lea.vmem [#allocation2], %s232
          %s234 = smul.u32 2, %s19
          %s236 = ssub.s32 512, 512
          %237 = vsyncadd %s230, %s236
          %s238 = smul.addr %s234, 128
          %s239 = scalar_lea.hbm %s0, %s238
          %s240 = sshll.u32 %s233, 4
          %s241 = int_to_ptr.vmem [resolvable:$true] %s240
          %246 = dma.hbm_to_vmem [thread:$0]  %s239, 512, %s241, %s230, 512, 256, 16
        $region36: #{tpu_custom_call.1} parent=31 // pred_fallthru
          _
      $region32: #{tpu_custom_call.1} parent=5 // pred_fallthru
        _
      %p247 = scmp.le.s32.totalorder 1, %s19
      %p248 = scmp.lt.s32.totalorder %s19, 3
      %p249 = pnand %p247, %p248
      %p250 = pneg %p249
      // Predicated region
      $region37: #{tpu_custom_call.1} parent=5 // pred_check
        _
      $region38: #{tpu_custom_call.1} parent=5 // pred_check_branch
        %252 = sbr.rel (%p249) target = $region40
      $region39: #{tpu_custom_call.1} parent=5 // pred_region
        %s253 = ssub.s32 %s19, 1
        %s254 = sand.u32 %s32, 1
        %s255 = scalar_lea.sflag [#allocation3], %s254
        %s256 = sand.u32 %s32, 1
        %s257 = smul.addr %s256, 32
        %s258 = scalar_lea.vmem [#allocation2], %s257
        // Predicated region
        $region41: #{tpu_custom_call.1} parent=39 // pred_check
          %p259 = pneg %p45
        $region42: #{tpu_custom_call.1} parent=39 // pred_check_branch
          %261 = sbr.rel (%p259) target = $region44
        $region43: #{tpu_custom_call.1} parent=39 // pred_region
          %262 = dma.done %s255, 512
        $region44: #{tpu_custom_call.1} parent=39 // pred_fallthru
          _
        // Predicated region
        $region45: #{tpu_custom_call.1} parent=39 // pred_check
          %p263 = pneg %p66
        $region46: #{tpu_custom_call.1} parent=39 // pred_check_branch
          %265 = sbr.rel (%p263) target = $region48
        $region47: #{tpu_custom_call.1} parent=39 // pred_region
          %266 = dma.done [#allocation6], 256
        $region48: #{tpu_custom_call.1} parent=39 // pred_fallthru
          _
        // Predicated region
        $region49: #{tpu_custom_call.1} parent=39 // pred_check
          %p267 = pneg %p87
        $region50: #{tpu_custom_call.1} parent=39 // pred_check_branch
          %269 = sbr.rel (%p267) target = $region52
        $region51: #{tpu_custom_call.1} parent=39 // pred_region
          %270 = dma.done [#allocation6], 128
        $region52: #{tpu_custom_call.1} parent=39 // pred_fallthru
          _
        // Predicated region
        $region53: #{tpu_custom_call.1} parent=39 // pred_check
          %p271 = pneg %p108
        $region54: #{tpu_custom_call.1} parent=39 // pred_check_branch
          %273 = sbr.rel (%p271) target = $region56
        $region55: #{tpu_custom_call.1} parent=39 // pred_region
          %274 = dma.done [#allocation9], 512
        $region56: #{tpu_custom_call.1} parent=39 // pred_fallthru
          _
        // Predicated region
        $region57: #{tpu_custom_call.1} parent=39 // pred_check
          %p275 = pneg %p129
        $region58: #{tpu_custom_call.1} parent=39 // pred_check_branch
          %277 = sbr.rel (%p275) target = $region60
        $region59: #{tpu_custom_call.1} parent=39 // pred_region
          %278 = dma.done [#allocation9], 256
        $region60: #{tpu_custom_call.1} parent=39 // pred_fallthru
          _
        %s279 = sand.u32 %s32, 1
        %s280 = scalar_lea.sflag [#allocation3], %s279
        %s281 = sand.u32 %s32, 1
        %s282 = smul.addr %s281, 32
        %s283 = scalar_lea.vmem [#allocation2], %s282
        %p284 = pneg %p45
        %p285 = pneg %p42
        %p286 = pneg %p66
        %p287 = pneg %p63
        %p288 = pneg %p87
        %p289 = pneg %p84
        %p290 = pneg %p108
        %p291 = pneg %p105
        %p292 = pneg %p129
        %p293 = pneg %p126
        %p294 = pneg %p155
        %p295 = pneg %p152
        %s296 = sand.u32 %s142, 1
        %s297 = scalar_lea.sflag [#allocation4], %s296
        %s298 = sand.u32 %s142, 1
        %s299 = smul.addr %s298, 32
        %s300 = scalar_lea.vmem [#allocation11], %s299
        %s301 = smul.u32 2, %s24
        %s302 = smul.u32 2, %s24
        %v304 = vld [vmem:[#allocation8] sm:$0xff]
        %v305 = vld [vmem:[#allocation8 + $0x8] sm:$0xff]
        %v306 = vld [vmem:[#allocation8 + $0x10] sm:$0xff]
        %v307 = vld [vmem:[#allocation8 + $0x18] sm:$0xff]
        %v308 = vld [vmem:[#allocation10] sm:$0xff]
        %v309 = vld [vmem:[#allocation10 + $0x8] sm:$0xff]
        %v310 = vlaneseq
        %v311 = vand.u32 %v310, 127
        %v312 = vadd.s32 %v311, 128
        %vm313 = vcmp.lt.s32.totalorder %v311, 0
        %v314 = vsub.s32 0, %v311
        %v315 = vsel %vm313, %v314, %v311
        %v316 = vshrl.u32 %v315, 8
        %v317 = vand.u32 %v315, 255
        %v318 = vsub.s32 0, %v317
        %v319 = vsel %vm313, %v318, %v317
        %vm320 = vcmp.lt.s32.totalorder %v312, 0
        %v321 = vsub.s32 0, %v312
        %v322 = vsel %vm320, %v321, %v312
        %v323 = vshrl.u32 %v322, 8
        %v324 = vand.u32 %v322, 255
        %v325 = vsub.s32 0, %v324
        %v326 = vsel %vm320, %v325, %v324
        %vm327 = vcmp.ne.s32.totalorder %v319, 0
        %vm328 = vcmp.ne.s32.totalorder %v326, 0
        %vm329 = vcmp.lt.s32.totalorder %v319, 0
        %vm330 = vcmp.lt.s32.totalorder %v326, 0
        %vm331 = vmand %vm329, %vm327
        %vm332 = vmand %vm330, %vm328
        %v333 = vadd.s32 %v319, 256
        %v334 = vadd.s32 %v326, 256
        %v335 = vsel %vm331, %v333, %v319
        %v336 = vsel %vm332, %v334, %v326
        %vm337 = vcmp.lt.s32.totalorder %v335, 0
        %v338 = vsub.s32 0, %v335
        %v339 = vsel %vm337, %v338, %v335
        %v340 = vshrl.u32 %v339, 4
        %v341 = vand.u32 %v339, 15
        %v342 = vsub.s32 0, %v341
        %v343 = vsel %vm337, %v342, %v341
        %vm344 = vcmp.lt.s32.totalorder %v336, 0
        %v345 = vsub.s32 0, %v336
        %v346 = vsel %vm344, %v345, %v336
        %v347 = vshrl.u32 %v346, 4
        %v348 = vand.u32 %v346, 15
        %v349 = vsub.s32 0, %v348
        %v350 = vsel %vm344, %v349, %v348
        %vm351 = vcmp.ne.s32.totalorder %v343, 0
        %vm352 = vcmp.ne.s32.totalorder %v350, 0
        %vm353 = vcmp.lt.s32.totalorder %v343, 0
        %vm354 = vcmp.lt.s32.totalorder %v350, 0
        %vm355 = vmand %vm353, %vm351
        %vm356 = vmand %vm354, %vm352
        %v357 = vadd.s32 %v343, 16
        %v358 = vadd.s32 %v350, 16
        %v359 = vsel %vm355, %v357, %v343
        %v360 = vsel %vm356, %v358, %v350
        %vm361 = vcmp.ge.s32.totalorder %v335, 16
        %vm362 = vcmp.ge.s32.totalorder %v336, 16
        %v363 = vsel %vm361, 1, 0
        %v364 = vsel %vm362, 1, 0
        %v365 = vcvt.s32.f32 %v363
        %v366 = vcvt.s32.f32 %v364
        %vm367 = vcmp.lt.s32.totalorder %v335, 240
        %vm368 = vcmp.lt.s32.totalorder %v336, 240
        %v369 = vsel %vm367, 1, 0
        %v370 = vsel %vm368, 1, 0
        %v371 = vcvt.s32.f32 %v369
        %v372 = vcvt.s32.f32 %v370
        %vm373 = vcmp.ge.s32.totalorder %v359, 1
        %vm374 = vcmp.ge.s32.totalorder %v360, 1
        %v375 = vsel %vm373, 1, 0
        %v376 = vsel %vm374, 1, 0
        %v377 = vcvt.s32.f32 %v375
        %v378 = vcvt.s32.f32 %v376
        %vm379 = vcmp.lt.s32.totalorder %v359, 15
        %vm380 = vcmp.lt.s32.totalorder %v360, 15
        %v381 = vsel %vm379, 1, 0
        %v382 = vsel %vm380, 1, 0
        %v383 = vcvt.s32.f32 %v381
        %v384 = vcvt.s32.f32 %v382
        %v385 = vmul.f32 %v365, %v377
        %v386 = vmul.f32 %v366, %v378
        %v387 = vmul.f32 %v365, %v383
        %v388 = vmul.f32 %v366, %v384
        %v389 = vmul.f32 %v371, %v377
        %v390 = vmul.f32 %v372, %v378
        %v391 = vmul.f32 %v371, %v383
        %v392 = vmul.f32 %v372, %v384
        %v393 = vld [vmem:[%s258] sm:$0xff]
        %v394 = vld [vmem:[%s258 + $0x8] sm:$0xff]
        %v395 = vld [vmem:[%s258 + $0x10] sm:$0xff]
        %v396 = vld [vmem:[%s258 + $0x18] sm:$0xff]
        %v397 = vld [vmem:[#allocation5] sm:$0xf]
        %v398 = vld [vmem:[#allocation5 + $0x4] sm:$0xf]
        %v399 = vld [vmem:[#allocation5 + $0x8] sm:$0xf]
        %v400 = vld [vmem:[#allocation5 + $0xc] sm:$0xf]
        %v401 = vpack.c.bf16 %v395, %v393
        %v402 = vpack.c.bf16 %v396, %v394
        %404 = vset.pattern.permute.xlu0 9
        %405 = vperm.xlu0 %404, %v304
        %v406 = vpop.permute.xlu0 %405
        %409 = vset.pattern.permute.xlu0 9
        %410 = vperm.xlu0 %409, %v305
        %v411 = vpop.permute.xlu0 %410
        %414 = vset.pattern.permute.xlu0 9
        %415 = vperm.xlu0 %414, %v306
        %v416 = vpop.permute.xlu0 %415
        %419 = vset.pattern.permute.xlu0 9
        %420 = vperm.xlu0 %419, %v307
        %v421 = vpop.permute.xlu0 %420
        %v427 = vunpack.c.l.b16 %v397
        %v428 = vunpack.c.l.b16 %v398
        %v429 = vunpack.c.l.b16 %v399
        %v430 = vunpack.c.l.b16 %v400
        %v431 = vpack.c.b16 %v428, %v427
        %v432 = vpack.c.b16 %v430, %v429
        %vm433 = vcmask 130048
        %v435 = vsel %vm433, %v431, 0
        %v438 = vsel %vm433, %v432, 0
        %440 = vmatprep.subr.bf16.mxu0 %v402
        %441 = vmatpush1.bf16.msra.mxu0 %v401
        %442 = vmatprep.subr.bf16.mxu0 0
        %443 = vmatpush1.bf16.msra.mxu0 0
        %444 = vmatprep.subr.bf16.mxu0 0
        %445 = vmatpush1.bf16.msra.mxu0 0
        %446 = vmatprep.subr.bf16.mxu0 0
        %447 = vmatpush1.bf16.msra.mxu0 0
        %448 = vmatprep.subr.bf16.mxu0 0
        %449 = vmatpush1.bf16.msra.mxu0 0
        %450 = vmatprep.subr.bf16.mxu0 0
        %451 = vmatpush1.bf16.msra.mxu0 0
        %452 = vmatprep.subr.bf16.mxu0 0
        %453 = vmatpush1.bf16.msra.mxu0 0
        %454 = vmatprep.subr.bf16.mxu0 0
        %455 = vmatpush1.bf16.msra.mxu0 0
        %456 = vmatprep.subr.bf16.mxu0 0
        %457 = vmatpush1.bf16.msra.mxu0 0
        %458 = vmatprep.subr.bf16.mxu0 0
        %459 = vmatpush1.bf16.msra.mxu0 0
        %460 = vmatprep.subr.bf16.mxu0 0
        %461 = vmatpush1.bf16.msra.mxu0 0
        %462 = vmatprep.subr.bf16.mxu0 0
        %463 = vmatpush1.bf16.msra.mxu0 0
        %464 = vmatprep.subr.bf16.mxu0 0
        %465 = vmatpush1.bf16.msra.mxu0 0
        %466 = vmatprep.subr.bf16.mxu0 0
        %467 = vmatpush1.bf16.msra.mxu0 0
        %468 = vmatprep.subr.bf16.mxu0 0
        %469 = vmatpush1.bf16.msra.mxu0 0
        %470 = vmatprep.subr.bf16.mxu0 0
        %471 = vmatpush1.bf16.msra.mxu0 0
        %472 = vmatprep.mubr.bf16.mxu0 0
        %473 = vmatmul.mubr.bf16.gmra.mrb[0].mxu0 %v435
        %v474 = vpop.f32.mrb[0].mxu0
        %v475 = vadd.f32 %v406, %v474
        %v476 = vpop.f32.mrb[0].mxu0
        %v477 = vadd.f32 %v406, %v476
        %v478 = vpop.f32.mrb[0].mxu0
        %v479 = vadd.f32 %v411, %v478
        %v480 = vpop.f32.mrb[0].mxu0
        %v481 = vadd.f32 %v411, %v480
        %482 = vmatprep.mubr.bf16.mxu0 0
        %483 = vmatmul.mubr.bf16.gmra.mrb[0].mxu0 %v438
        %v484 = vpop.f32.mrb[0].mxu0
        %v485 = vadd.f32 %v416, %v484
        %v486 = vpop.f32.mrb[0].mxu0
        %v487 = vadd.f32 %v416, %v486
        %v488 = vpop.f32.mrb[0].mxu0
        %v489 = vadd.f32 %v421, %v488
        %v490 = vpop.f32.mrb[0].mxu0
        %v491 = vadd.f32 %v421, %v490
        %492 = vdwg.mxu0
        %vm493 = vcmp.ge.f32.partialorder %v475, 0.0
        %vm494 = vcmp.ge.f32.partialorder %v477, 0.0
        %vm495 = vcmp.ge.f32.partialorder %v479, 0.0
        %vm496 = vcmp.ge.f32.partialorder %v481, 0.0
        %vm497 = vcmp.ge.f32.partialorder %v485, 0.0
        %vm498 = vcmp.ge.f32.partialorder %v487, 0.0
        %vm499 = vcmp.ge.f32.partialorder %v489, 0.0
        %vm500 = vcmp.ge.f32.partialorder %v491, 0.0
        %501 = vset.pattern.permute.xlu0 10
        %502 = vperm.xlu0 %501, %v304
        %v503 = vpop.permute.xlu0 %502
        %505 = vset.pattern.permute.xlu0 10
        %506 = vperm.xlu0 %505, %v305
        %v507 = vpop.permute.xlu0 %506
        %509 = vset.pattern.permute.xlu0 10
        %510 = vperm.xlu0 %509, %v306
        %v511 = vpop.permute.xlu0 %510
        %513 = vset.pattern.permute.xlu0 10
        %514 = vperm.xlu0 %513, %v307
        %v515 = vpop.permute.xlu0 %514
        %v517 = vmul.f32 %v503, %v475
        %v518 = vmul.f32 %v503, %v477
        %v519 = vmul.f32 %v507, %v479
        %v520 = vmul.f32 %v507, %v481
        %v521 = vmul.f32 %v511, %v485
        %v522 = vmul.f32 %v511, %v487
        %v523 = vmul.f32 %v515, %v489
        %v524 = vmul.f32 %v515, %v491
        %v525 = vsel %vm493, %v475, %v517
        %v526 = vsel %vm494, %v477, %v518
        %v527 = vsel %vm495, %v479, %v519
        %v528 = vsel %vm496, %v481, %v520
        %v529 = vsel %vm497, %v485, %v521
        %v530 = vsel %vm498, %v487, %v522
        %v531 = vsel %vm499, %v489, %v523
        %v532 = vsel %vm500, %v491, %v524
        %533 = vset.pattern.permute.xlu0 4
        %534 = vperm.xlu0 %533, %v304
        %v535 = vpop.permute.xlu0 %534
        %537 = vset.pattern.permute.xlu0 4
        %538 = vperm.xlu0 %537, %v305
        %v539 = vpop.permute.xlu0 %538
        %541 = vset.pattern.permute.xlu0 4
        %542 = vperm.xlu0 %541, %v306
        %v543 = vpop.permute.xlu0 %542
        %545 = vset.pattern.permute.xlu0 4
        %546 = vperm.xlu0 %545, %v307
        %v547 = vpop.permute.xlu0 %546
        %v549 = vmul.f32 %v525, %v535
        %v550 = vmul.f32 %v526, %v535
        %v551 = vmul.f32 %v527, %v539
        %v552 = vmul.f32 %v528, %v539
        %v553 = vmul.f32 %v529, %v543
        %v554 = vmul.f32 %v530, %v543
        %v555 = vmul.f32 %v531, %v547
        %v556 = vmul.f32 %v532, %v547
        %557 = vrot.lane.b32.xlu0 %v525, 17
        %v558 = vpop.permute.xlu0 %557
        %559 = vrot.lane.b32.xlu0 %v527, 17
        %v560 = vpop.permute.xlu0 %559
        %561 = vrot.lane.b32.xlu0 %v529, 17
        %v562 = vpop.permute.xlu0 %561
        %563 = vrot.lane.b32.xlu0 %v531, 17
        %v564 = vpop.permute.xlu0 %563
        %565 = vrot.lane.b32.xlu0 %v526, 17
        %v566 = vpop.permute.xlu0 %565
        %567 = vrot.lane.b32.xlu0 %v528, 17
        %v568 = vpop.permute.xlu0 %567
        %569 = vrot.lane.b32.xlu0 %v530, 17
        %v570 = vpop.permute.xlu0 %569
        %571 = vrot.lane.b32.xlu0 %v532, 17
        %v572 = vpop.permute.xlu0 %571
        %vm573 = vcmp.lt.s32.totalorder %v311, 17
        %v574 = vsel %vm573, %v558, %v566
        %v575 = vsel %vm573, %v560, %v568
        %v576 = vsel %vm573, %v562, %v570
        %v577 = vsel %vm573, %v564, %v572
        %v578 = vsel %vm573, %v566, %v558
        %v579 = vsel %vm573, %v568, %v560
        %v580 = vsel %vm573, %v570, %v562
        %v581 = vsel %vm573, %v572, %v564
        %v582 = vmul.f32 %v578, %v385
        %v583 = vmul.f32 %v574, %v386
        %v584 = vmul.f32 %v579, %v385
        %v585 = vmul.f32 %v575, %v386
        %v586 = vmul.f32 %v580, %v385
        %v587 = vmul.f32 %v576, %v386
        %v588 = vmul.f32 %v581, %v385
        %v589 = vmul.f32 %v577, %v386
        %590 = vset.pattern.permute.xlu0 0
        %591 = vperm.xlu0 %590, %v304
        %v592 = vpop.permute.xlu0 %591
        %594 = vset.pattern.permute.xlu0 0
        %595 = vperm.xlu0 %594, %v305
        %v596 = vpop.permute.xlu0 %595
        %598 = vset.pattern.permute.xlu0 0
        %599 = vperm.xlu0 %598, %v306
        %v600 = vpop.permute.xlu0 %599
        %602 = vset.pattern.permute.xlu0 0
        %603 = vperm.xlu0 %602, %v307
        %v604 = vpop.permute.xlu0 %603
        %v606 = vmul.f32 %v582, %v592
        %v607 = vmul.f32 %v583, %v592
        %v608 = vmul.f32 %v584, %v596
        %v609 = vmul.f32 %v585, %v596
        %v610 = vmul.f32 %v586, %v600
        %v611 = vmul.f32 %v587, %v600
        %v612 = vmul.f32 %v588, %v604
        %v613 = vmul.f32 %v589, %v604
        %v614 = vadd.f32 %v549, %v606
        %v615 = vadd.f32 %v550, %v607
        %v616 = vadd.f32 %v551, %v608
        %v617 = vadd.f32 %v552, %v609
        %v618 = vadd.f32 %v553, %v610
        %v619 = vadd.f32 %v554, %v611
        %v620 = vadd.f32 %v555, %v612
        %v621 = vadd.f32 %v556, %v613
        %622 = vrot.lane.b32.xlu0 %v525, 16
        %v623 = vpop.permute.xlu0 %622
        %624 = vrot.lane.b32.xlu0 %v527, 16
        %v625 = vpop.permute.xlu0 %624
        %626 = vrot.lane.b32.xlu0 %v529, 16
        %v627 = vpop.permute.xlu0 %626
        %628 = vrot.lane.b32.xlu0 %v531, 16
        %v629 = vpop.permute.xlu0 %628
        %630 = vrot.lane.b32.xlu0 %v526, 16
        %v631 = vpop.permute.xlu0 %630
        %632 = vrot.lane.b32.xlu0 %v528, 16
        %v633 = vpop.permute.xlu0 %632
        %634 = vrot.lane.b32.xlu0 %v530, 16
        %v635 = vpop.permute.xlu0 %634
        %636 = vrot.lane.b32.xlu0 %v532, 16
        %v637 = vpop.permute.xlu0 %636
        %vm638 = vcmp.lt.s32.totalorder %v311, 16
        %v639 = vsel %vm638, %v623, %v631
        %v640 = vsel %vm638, %v625, %v633
        %v641 = vsel %vm638, %v627, %v635
        %v642 = vsel %vm638, %v629, %v637
        %v643 = vsel %vm638, %v631, %v623
        %v644 = vsel %vm638, %v633, %v625
        %v645 = vsel %vm638, %v635, %v627
        %v646 = vsel %vm638, %v637, %v629
        %v647 = vmul.f32 %v643, %v365
        %v648 = vmul.f32 %v639, %v366
        %v649 = vmul.f32 %v644, %v365
        %v650 = vmul.f32 %v640, %v366
        %v651 = vmul.f32 %v645, %v365
        %v652 = vmul.f32 %v641, %v366
        %v653 = vmul.f32 %v646, %v365
        %v654 = vmul.f32 %v642, %v366
        %655 = vset.pattern.permute.xlu0 1
        %656 = vperm.xlu0 %655, %v304
        %v657 = vpop.permute.xlu0 %656
        %659 = vset.pattern.permute.xlu0 1
        %660 = vperm.xlu0 %659, %v305
        %v661 = vpop.permute.xlu0 %660
        %663 = vset.pattern.permute.xlu0 1
        %664 = vperm.xlu0 %663, %v306
        %v665 = vpop.permute.xlu0 %664
        %667 = vset.pattern.permute.xlu0 1
        %668 = vperm.xlu0 %667, %v307
        %v669 = vpop.permute.xlu0 %668
        %v671 = vmul.f32 %v647, %v657
        %v672 = vmul.f32 %v648, %v657
        %v673 = vmul.f32 %v649, %v661
        %v674 = vmul.f32 %v650, %v661
        %v675 = vmul.f32 %v651, %v665
        %v676 = vmul.f32 %v652, %v665
        %v677 = vmul.f32 %v653, %v669
        %v678 = vmul.f32 %v654, %v669
        %v679 = vadd.f32 %v614, %v671
        %v680 = vadd.f32 %v615, %v672
        %v681 = vadd.f32 %v616, %v673
        %v682 = vadd.f32 %v617, %v674
        %v683 = vadd.f32 %v618, %v675
        %v684 = vadd.f32 %v619, %v676
        %v685 = vadd.f32 %v620, %v677
        %v686 = vadd.f32 %v621, %v678
        %687 = vrot.lane.b32.xlu0 %v525, 15
        %v688 = vpop.permute.xlu0 %687
        %689 = vrot.lane.b32.xlu0 %v527, 15
        %v690 = vpop.permute.xlu0 %689
        %691 = vrot.lane.b32.xlu0 %v529, 15
        %v692 = vpop.permute.xlu0 %691
        %693 = vrot.lane.b32.xlu0 %v531, 15
        %v694 = vpop.permute.xlu0 %693
        %695 = vrot.lane.b32.xlu0 %v526, 15
        %v696 = vpop.permute.xlu0 %695
        %697 = vrot.lane.b32.xlu0 %v528, 15
        %v698 = vpop.permute.xlu0 %697
        %699 = vrot.lane.b32.xlu0 %v530, 15
        %v700 = vpop.permute.xlu0 %699
        %701 = vrot.lane.b32.xlu0 %v532, 15
        %v702 = vpop.permute.xlu0 %701
        %vm703 = vcmp.lt.s32.totalorder %v311, 15
        %v704 = vsel %vm703, %v688, %v696
        %v705 = vsel %vm703, %v690, %v698
        %v706 = vsel %vm703, %v692, %v700
        %v707 = vsel %vm703, %v694, %v702
        %v708 = vsel %vm703, %v696, %v688
        %v709 = vsel %vm703, %v698, %v690
        %v710 = vsel %vm703, %v700, %v692
        %v711 = vsel %vm703, %v702, %v694
        %v712 = vmul.f32 %v708, %v387
        %v713 = vmul.f32 %v704, %v388
        %v714 = vmul.f32 %v709, %v387
        %v715 = vmul.f32 %v705, %v388
        %v716 = vmul.f32 %v710, %v387
        %v717 = vmul.f32 %v706, %v388
        %v718 = vmul.f32 %v711, %v387
        %v719 = vmul.f32 %v707, %v388
        %720 = vset.pattern.permute.xlu0 2
        %721 = vperm.xlu0 %720, %v304
        %v722 = vpop.permute.xlu0 %721
        %724 = vset.pattern.permute.xlu0 2
        %725 = vperm.xlu0 %724, %v305
        %v726 = vpop.permute.xlu0 %725
        %728 = vset.pattern.permute.xlu0 2
        %729 = vperm.xlu0 %728, %v306
        %v730 = vpop.permute.xlu0 %729
        %732 = vset.pattern.permute.xlu0 2
        %733 = vperm.xlu0 %732, %v307
        %v734 = vpop.permute.xlu0 %733
        %v736 = vmul.f32 %v712, %v722
        %v737 = vmul.f32 %v713, %v722
        %v738 = vmul.f32 %v714, %v726
        %v739 = vmul.f32 %v715, %v726
        %v740 = vmul.f32 %v716, %v730
        %v741 = vmul.f32 %v717, %v730
        %v742 = vmul.f32 %v718, %v734
        %v743 = vmul.f32 %v719, %v734
        %v744 = vadd.f32 %v679, %v736
        %v745 = vadd.f32 %v680, %v737
        %v746 = vadd.f32 %v681, %v738
        %v747 = vadd.f32 %v682, %v739
        %v748 = vadd.f32 %v683, %v740
        %v749 = vadd.f32 %v684, %v741
        %v750 = vadd.f32 %v685, %v742
        %v751 = vadd.f32 %v686, %v743
        %752 = vrot.lane.b32.xlu0 %v525, 1
        %v753 = vpop.permute.xlu0 %752
        %754 = vrot.lane.b32.xlu0 %v527, 1
        %v755 = vpop.permute.xlu0 %754
        %756 = vrot.lane.b32.xlu0 %v529, 1
        %v757 = vpop.permute.xlu0 %756
        %758 = vrot.lane.b32.xlu0 %v531, 1
        %v759 = vpop.permute.xlu0 %758
        %760 = vrot.lane.b32.xlu0 %v526, 1
        %v761 = vpop.permute.xlu0 %760
        %762 = vrot.lane.b32.xlu0 %v528, 1
        %v763 = vpop.permute.xlu0 %762
        %764 = vrot.lane.b32.xlu0 %v530, 1
        %v765 = vpop.permute.xlu0 %764
        %766 = vrot.lane.b32.xlu0 %v532, 1
        %v767 = vpop.permute.xlu0 %766
        %vm768 = vcmp.lt.s32.totalorder %v311, 1
        %v769 = vsel %vm768, %v753, %v761
        %v770 = vsel %vm768, %v755, %v763
        %v771 = vsel %vm768, %v757, %v765
        %v772 = vsel %vm768, %v759, %v767
        %v773 = vsel %vm768, %v761, %v753
        %v774 = vsel %vm768, %v763, %v755
        %v775 = vsel %vm768, %v765, %v757
        %v776 = vsel %vm768, %v767, %v759
        %v777 = vmul.f32 %v773, %v377
        %v778 = vmul.f32 %v769, %v378
        %v779 = vmul.f32 %v774, %v377
        %v780 = vmul.f32 %v770, %v378
        %v781 = vmul.f32 %v775, %v377
        %v782 = vmul.f32 %v771, %v378
        %v783 = vmul.f32 %v776, %v377
        %v784 = vmul.f32 %v772, %v378
        %785 = vset.pattern.permute.xlu0 3
        %786 = vperm.xlu0 %785, %v304
        %v787 = vpop.permute.xlu0 %786
        %789 = vset.pattern.permute.xlu0 3
        %790 = vperm.xlu0 %789, %v305
        %v791 = vpop.permute.xlu0 %790
        %793 = vset.pattern.permute.xlu0 3
        %794 = vperm.xlu0 %793, %v306
        %v795 = vpop.permute.xlu0 %794
        %797 = vset.pattern.permute.xlu0 3
        %798 = vperm.xlu0 %797, %v307
        %v799 = vpop.permute.xlu0 %798
        %v801 = vmul.f32 %v777, %v787
        %v802 = vmul.f32 %v778, %v787
        %v803 = vmul.f32 %v779, %v791
        %v804 = vmul.f32 %v780, %v791
        %v805 = vmul.f32 %v781, %v795
        %v806 = vmul.f32 %v782, %v795
        %v807 = vmul.f32 %v783, %v799
        %v808 = vmul.f32 %v784, %v799
        %v809 = vadd.f32 %v744, %v801
        %v810 = vadd.f32 %v745, %v802
        %v811 = vadd.f32 %v746, %v803
        %v812 = vadd.f32 %v747, %v804
        %v813 = vadd.f32 %v748, %v805
        %v814 = vadd.f32 %v749, %v806
        %v815 = vadd.f32 %v750, %v807
        %v816 = vadd.f32 %v751, %v808
        %817 = vrot.lane.b32.xlu0 %v525, 127
        %v818 = vpop.permute.xlu0 %817
        %819 = vrot.lane.b32.xlu0 %v527, 127
        %v820 = vpop.permute.xlu0 %819
        %821 = vrot.lane.b32.xlu0 %v529, 127
        %v822 = vpop.permute.xlu0 %821
        %823 = vrot.lane.b32.xlu0 %v531, 127
        %v824 = vpop.permute.xlu0 %823
        %825 = vrot.lane.b32.xlu0 %v526, 127
        %v826 = vpop.permute.xlu0 %825
        %827 = vrot.lane.b32.xlu0 %v528, 127
        %v828 = vpop.permute.xlu0 %827
        %829 = vrot.lane.b32.xlu0 %v530, 127
        %v830 = vpop.permute.xlu0 %829
        %831 = vrot.lane.b32.xlu0 %v532, 127
        %v832 = vpop.permute.xlu0 %831
        %vm833 = vcmp.lt.s32.totalorder %v311, 127
        %v834 = vsel %vm833, %v818, %v826
        %v835 = vsel %vm833, %v820, %v828
        %v836 = vsel %vm833, %v822, %v830
        %v837 = vsel %vm833, %v824, %v832
        %v838 = vsel %vm833, %v826, %v818
        %v839 = vsel %vm833, %v828, %v820
        %v840 = vsel %vm833, %v830, %v822
        %v841 = vsel %vm833, %v832, %v824
        %v842 = vmul.f32 %v834, %v383
        %v843 = vmul.f32 %v838, %v384
        %v844 = vmul.f32 %v835, %v383
        %v845 = vmul.f32 %v839, %v384
        %v846 = vmul.f32 %v836, %v383
        %v847 = vmul.f32 %v840, %v384
        %v848 = vmul.f32 %v837, %v383
        %v849 = vmul.f32 %v841, %v384
        %850 = vset.pattern.permute.xlu0 5
        %851 = vperm.xlu0 %850, %v304
        %v852 = vpop.permute.xlu0 %851
        %854 = vset.pattern.permute.xlu0 5
        %855 = vperm.xlu0 %854, %v305
        %v856 = vpop.permute.xlu0 %855
        %858 = vset.pattern.permute.xlu0 5
        %859 = vperm.xlu0 %858, %v306
        %v860 = vpop.permute.xlu0 %859
        %862 = vset.pattern.permute.xlu0 5
        %863 = vperm.xlu0 %862, %v307
        %v864 = vpop.permute.xlu0 %863
        %v866 = vmul.f32 %v842, %v852
        %v867 = vmul.f32 %v843, %v852
        %v868 = vmul.f32 %v844, %v856
        %v869 = vmul.f32 %v845, %v856
        %v870 = vmul.f32 %v846, %v860
        %v871 = vmul.f32 %v847, %v860
        %v872 = vmul.f32 %v848, %v864
        %v873 = vmul.f32 %v849, %v864
        %v874 = vadd.f32 %v809, %v866
        %v875 = vadd.f32 %v810, %v867
        %v876 = vadd.f32 %v811, %v868
        %v877 = vadd.f32 %v812, %v869
        %v878 = vadd.f32 %v813, %v870
        %v879 = vadd.f32 %v814, %v871
        %v880 = vadd.f32 %v815, %v872
        %v881 = vadd.f32 %v816, %v873
        %882 = vrot.lane.b32.xlu0 %v525, 113
        %v883 = vpop.permute.xlu0 %882
        %884 = vrot.lane.b32.xlu0 %v527, 113
        %v885 = vpop.permute.xlu0 %884
        %886 = vrot.lane.b32.xlu0 %v529, 113
        %v887 = vpop.permute.xlu0 %886
        %888 = vrot.lane.b32.xlu0 %v531, 113
        %v889 = vpop.permute.xlu0 %888
        %890 = vrot.lane.b32.xlu0 %v526, 113
        %v891 = vpop.permute.xlu0 %890
        %892 = vrot.lane.b32.xlu0 %v528, 113
        %v893 = vpop.permute.xlu0 %892
        %894 = vrot.lane.b32.xlu0 %v530, 113
        %v895 = vpop.permute.xlu0 %894
        %896 = vrot.lane.b32.xlu0 %v532, 113
        %v897 = vpop.permute.xlu0 %896
        %vm898 = vcmp.lt.s32.totalorder %v311, 113
        %v899 = vsel %vm898, %v883, %v891
        %v900 = vsel %vm898, %v885, %v893
        %v901 = vsel %vm898, %v887, %v895
        %v902 = vsel %vm898, %v889, %v897
        %v903 = vsel %vm898, %v891, %v883
        %v904 = vsel %vm898, %v893, %v885
        %v905 = vsel %vm898, %v895, %v887
        %v906 = vsel %vm898, %v897, %v889
        %v907 = vmul.f32 %v899, %v389
        %v908 = vmul.f32 %v903, %v390
        %v909 = vmul.f32 %v900, %v389
        %v910 = vmul.f32 %v904, %v390
        %v911 = vmul.f32 %v901, %v389
        %v912 = vmul.f32 %v905, %v390
        %v913 = vmul.f32 %v902, %v389
        %v914 = vmul.f32 %v906, %v390
        %915 = vset.pattern.permute.xlu0 6
        %916 = vperm.xlu0 %915, %v304
        %v917 = vpop.permute.xlu0 %916
        %919 = vset.pattern.permute.xlu0 6
        %920 = vperm.xlu0 %919, %v305
        %v921 = vpop.permute.xlu0 %920
        %923 = vset.pattern.permute.xlu0 6
        %924 = vperm.xlu0 %923, %v306
        %v925 = vpop.permute.xlu0 %924
        %927 = vset.pattern.permute.xlu0 6
        %928 = vperm.xlu0 %927, %v307
        %v929 = vpop.permute.xlu0 %928
        %v931 = vmul.f32 %v907, %v917
        %v932 = vmul.f32 %v908, %v917
        %v933 = vmul.f32 %v909, %v921
        %v934 = vmul.f32 %v910, %v921
        %v935 = vmul.f32 %v911, %v925
        %v936 = vmul.f32 %v912, %v925
        %v937 = vmul.f32 %v913, %v929
        %v938 = vmul.f32 %v914, %v929
        %v939 = vadd.f32 %v874, %v931
        %v940 = vadd.f32 %v875, %v932
        %v941 = vadd.f32 %v876, %v933
        %v942 = vadd.f32 %v877, %v934
        %v943 = vadd.f32 %v878, %v935
        %v944 = vadd.f32 %v879, %v936
        %v945 = vadd.f32 %v880, %v937
        %v946 = vadd.f32 %v881, %v938
        %947 = vrot.lane.b32.xlu0 %v525, 112
        %v948 = vpop.permute.xlu0 %947
        %949 = vrot.lane.b32.xlu0 %v527, 112
        %v950 = vpop.permute.xlu0 %949
        %951 = vrot.lane.b32.xlu0 %v529, 112
        %v952 = vpop.permute.xlu0 %951
        %953 = vrot.lane.b32.xlu0 %v531, 112
        %v954 = vpop.permute.xlu0 %953
        %955 = vrot.lane.b32.xlu0 %v526, 112
        %v956 = vpop.permute.xlu0 %955
        %957 = vrot.lane.b32.xlu0 %v528, 112
        %v958 = vpop.permute.xlu0 %957
        %959 = vrot.lane.b32.xlu0 %v530, 112
        %v960 = vpop.permute.xlu0 %959
        %961 = vrot.lane.b32.xlu0 %v532, 112
        %v962 = vpop.permute.xlu0 %961
        %vm963 = vcmp.lt.s32.totalorder %v311, 112
        %v964 = vsel %vm963, %v948, %v956
        %v965 = vsel %vm963, %v950, %v958
        %v966 = vsel %vm963, %v952, %v960
        %v967 = vsel %vm963, %v954, %v962
        %v968 = vsel %vm963, %v956, %v948
        %v969 = vsel %vm963, %v958, %v950
        %v970 = vsel %vm963, %v960, %v952
        %v971 = vsel %vm963, %v962, %v954
        %v972 = vmul.f32 %v964, %v371
        %v973 = vmul.f32 %v968, %v372
        %v974 = vmul.f32 %v965, %v371
        %v975 = vmul.f32 %v969, %v372
        %v976 = vmul.f32 %v966, %v371
        %v977 = vmul.f32 %v970, %v372
        %v978 = vmul.f32 %v967, %v371
        %v979 = vmul.f32 %v971, %v372
        %980 = vset.pattern.permute.xlu0 7
        %981 = vperm.xlu0 %980, %v304
        %v982 = vpop.permute.xlu0 %981
        %984 = vset.pattern.permute.xlu0 7
        %985 = vperm.xlu0 %984, %v305
        %v986 = vpop.permute.xlu0 %985
        %988 = vset.pattern.permute.xlu0 7
        %989 = vperm.xlu0 %988, %v306
        %v990 = vpop.permute.xlu0 %989
        %992 = vset.pattern.permute.xlu0 7
        %993 = vperm.xlu0 %992, %v307
        %v994 = vpop.permute.xlu0 %993
        %v996 = vmul.f32 %v972, %v982
        %v997 = vmul.f32 %v973, %v982
        %v998 = vmul.f32 %v974, %v986
        %v999 = vmul.f32 %v975, %v986
        %v1000 = vmul.f32 %v976, %v990
        %v1001 = vmul.f32 %v977, %v990
        %v1002 = vmul.f32 %v978, %v994
        %v1003 = vmul.f32 %v979, %v994
        %v1004 = vadd.f32 %v939, %v996
        %v1005 = vadd.f32 %v940, %v997
        %v1006 = vadd.f32 %v941, %v998
        %v1007 = vadd.f32 %v942, %v999
        %v1008 = vadd.f32 %v943, %v1000
        %v1009 = vadd.f32 %v944, %v1001
        %v1010 = vadd.f32 %v945, %v1002
        %v1011 = vadd.f32 %v946, %v1003
        %1012 = vrot.lane.b32.xlu0 %v525, 111
        %v1013 = vpop.permute.xlu0 %1012
        %1014 = vrot.lane.b32.xlu0 %v527, 111
        %v1015 = vpop.permute.xlu0 %1014
        %1016 = vrot.lane.b32.xlu0 %v529, 111
        %v1017 = vpop.permute.xlu0 %1016
        %1018 = vrot.lane.b32.xlu0 %v531, 111
        %v1019 = vpop.permute.xlu0 %1018
        %1020 = vrot.lane.b32.xlu0 %v526, 111
        %v1021 = vpop.permute.xlu0 %1020
        %1022 = vrot.lane.b32.xlu0 %v528, 111
        %v1023 = vpop.permute.xlu0 %1022
        %1024 = vrot.lane.b32.xlu0 %v530, 111
        %v1025 = vpop.permute.xlu0 %1024
        %1026 = vrot.lane.b32.xlu0 %v532, 111
        %v1027 = vpop.permute.xlu0 %1026
        %vm1028 = vcmp.lt.s32.totalorder %v311, 111
        %v1029 = vsel %vm1028, %v1013, %v1021
        %v1030 = vsel %vm1028, %v1015, %v1023
        %v1031 = vsel %vm1028, %v1017, %v1025
        %v1032 = vsel %vm1028, %v1019, %v1027
        %v1033 = vsel %vm1028, %v1021, %v1013
        %v1034 = vsel %vm1028, %v1023, %v1015
        %v1035 = vsel %vm1028, %v1025, %v1017
        %v1036 = vsel %vm1028, %v1027, %v1019
        %v1037 = vmul.f32 %v1029, %v391
        %v1038 = vmul.f32 %v1033, %v392
        %v1039 = vmul.f32 %v1030, %v391
        %v1040 = vmul.f32 %v1034, %v392
        %v1041 = vmul.f32 %v1031, %v391
        %v1042 = vmul.f32 %v1035, %v392
        %v1043 = vmul.f32 %v1032, %v391
        %v1044 = vmul.f32 %v1036, %v392
        %1045 = vset.pattern.permute.xlu0 8
        %1046 = vperm.xlu0 %1045, %v304
        %v1047 = vpop.permute.xlu0 %1046
        %1049 = vset.pattern.permute.xlu0 8
        %1050 = vperm.xlu0 %1049, %v305
        %v1051 = vpop.permute.xlu0 %1050
        %1053 = vset.pattern.permute.xlu0 8
        %1054 = vperm.xlu0 %1053, %v306
        %v1055 = vpop.permute.xlu0 %1054
        %1057 = vset.pattern.permute.xlu0 8
        %1058 = vperm.xlu0 %1057, %v307
        %v1059 = vpop.permute.xlu0 %1058
        %v1061 = vmul.f32 %v1037, %v1047
        %v1062 = vmul.f32 %v1038, %v1047
        %v1063 = vmul.f32 %v1039, %v1051
        %v1064 = vmul.f32 %v1040, %v1051
        %v1065 = vmul.f32 %v1041, %v1055
        %v1066 = vmul.f32 %v1042, %v1055
        %v1067 = vmul.f32 %v1043, %v1059
        %v1068 = vmul.f32 %v1044, %v1059
        %v1069 = vadd.f32 %v1004, %v1061
        %v1070 = vadd.f32 %v1005, %v1062
        %v1071 = vadd.f32 %v1006, %v1063
        %v1072 = vadd.f32 %v1007, %v1064
        %v1073 = vadd.f32 %v1008, %v1065
        %v1074 = vadd.f32 %v1009, %v1066
        %v1075 = vadd.f32 %v1010, %v1067
        %v1076 = vadd.f32 %v1011, %v1068
        %1077 = vset.pattern.permute.xlu0 11
        %1078 = vperm.xlu0 %1077, %v304
        %v1079 = vpop.permute.xlu0 %1078
        %1081 = vset.pattern.permute.xlu0 11
        %1082 = vperm.xlu0 %1081, %v305
        %v1083 = vpop.permute.xlu0 %1082
        %1085 = vset.pattern.permute.xlu0 11
        %1086 = vperm.xlu0 %1085, %v306
        %v1087 = vpop.permute.xlu0 %1086
        %1089 = vset.pattern.permute.xlu0 11
        %1090 = vperm.xlu0 %1089, %v307
        %v1091 = vpop.permute.xlu0 %1090
        %v1093 = vadd.f32 %v1069, %v1079
        %v1094 = vadd.f32 %v1070, %v1079
        %v1095 = vadd.f32 %v1071, %v1083
        %v1096 = vadd.f32 %v1072, %v1083
        %v1097 = vadd.f32 %v1073, %v1087
        %v1098 = vadd.f32 %v1074, %v1087
        %v1099 = vadd.f32 %v1075, %v1091
        %v1100 = vadd.f32 %v1076, %v1091
        %vm1101 = vcmp.ge.f32.partialorder %v1093, 0.0
        %vm1102 = vcmp.ge.f32.partialorder %v1094, 0.0
        %vm1103 = vcmp.ge.f32.partialorder %v1095, 0.0
        %vm1104 = vcmp.ge.f32.partialorder %v1096, 0.0
        %vm1105 = vcmp.ge.f32.partialorder %v1097, 0.0
        %vm1106 = vcmp.ge.f32.partialorder %v1098, 0.0
        %vm1107 = vcmp.ge.f32.partialorder %v1099, 0.0
        %vm1108 = vcmp.ge.f32.partialorder %v1100, 0.0
        %1109 = vset.pattern.permute.xlu0 12
        %1110 = vperm.xlu0 %1109, %v304
        %v1111 = vpop.permute.xlu0 %1110
        %1113 = vset.pattern.permute.xlu0 12
        %1114 = vperm.xlu0 %1113, %v305
        %v1115 = vpop.permute.xlu0 %1114
        %1117 = vset.pattern.permute.xlu0 12
        %1118 = vperm.xlu0 %1117, %v306
        %v1119 = vpop.permute.xlu0 %1118
        %1121 = vset.pattern.permute.xlu0 12
        %1122 = vperm.xlu0 %1121, %v307
        %v1123 = vpop.permute.xlu0 %1122
        %v1125 = vmul.f32 %v1111, %v1093
        %v1126 = vmul.f32 %v1111, %v1094
        %v1127 = vmul.f32 %v1115, %v1095
        %v1128 = vmul.f32 %v1115, %v1096
        %v1129 = vmul.f32 %v1119, %v1097
        %v1130 = vmul.f32 %v1119, %v1098
        %v1131 = vmul.f32 %v1123, %v1099
        %v1132 = vmul.f32 %v1123, %v1100
        %v1133 = vsel %vm1101, %v1093, %v1125
        %v1134 = vsel %vm1102, %v1094, %v1126
        %v1135 = vsel %vm1103, %v1095, %v1127
        %v1136 = vsel %vm1104, %v1096, %v1128
        %v1137 = vsel %vm1105, %v1097, %v1129
        %v1138 = vsel %vm1106, %v1098, %v1130
        %v1139 = vsel %vm1107, %v1099, %v1131
        %v1140 = vsel %vm1108, %v1100, %v1132
        %v1141 = vld [vmem:[#allocation7] sm:$0xf]
        %v1142 = vld [vmem:[#allocation7 + $0x4] sm:$0xf]
        %v1143 = vpack.c.bf16 %v1135, %v1133
        %v1144 = vpack.c.bf16 %v1136, %v1134
        %v1145 = vpack.c.bf16 %v1139, %v1137
        %v1146 = vpack.c.bf16 %v1140, %v1138
        %1148 = vset.pattern.permute.xlu0 0
        %1149 = vperm.xlu0 %1148, %v308
        %v1150 = vpop.permute.xlu0 %1149
        %1153 = vset.pattern.permute.xlu0 0
        %1154 = vperm.xlu0 %1153, %v309
        %v1155 = vpop.permute.xlu0 %1154
        %v1159 = vunpack.c.l.b16 %v1141
        %v1160 = vunpack.c.l.b16 %v1142
        %v1161 = vpack.c.b16 %v1160, %v1159
        %vm1162 = vcmask 261120
        %v1164 = vsel %vm1162, %v1161, 0
        %1166 = vmatprep.subr.bf16.mxu0 %v1144
        %1167 = vmatpush1.bf16.msra.mxu0 %v1143
        %1168 = vmatprep.subr.bf16.mxu0 %v1146
        %1169 = vmatpush1.bf16.msra.mxu0 %v1145
        %1170 = vmatprep.subr.bf16.mxu0 0
        %1171 = vmatpush1.bf16.msra.mxu0 0
        %1172 = vmatprep.subr.bf16.mxu0 0
        %1173 = vmatpush1.bf16.msra.mxu0 0
        %1174 = vmatprep.subr.bf16.mxu0 0
        %1175 = vmatpush1.bf16.msra.mxu0 0
        %1176 = vmatprep.subr.bf16.mxu0 0
        %1177 = vmatpush1.bf16.msra.mxu0 0
        %1178 = vmatprep.subr.bf16.mxu0 0
        %1179 = vmatpush1.bf16.msra.mxu0 0
        %1180 = vmatprep.subr.bf16.mxu0 0
        %1181 = vmatpush1.bf16.msra.mxu0 0
        %1182 = vmatprep.subr.bf16.mxu0 0
        %1183 = vmatpush1.bf16.msra.mxu0 0
        %1184 = vmatprep.subr.bf16.mxu0 0
        %1185 = vmatpush1.bf16.msra.mxu0 0
        %1186 = vmatprep.subr.bf16.mxu0 0
        %1187 = vmatpush1.bf16.msra.mxu0 0
        %1188 = vmatprep.subr.bf16.mxu0 0
        %1189 = vmatpush1.bf16.msra.mxu0 0
        %1190 = vmatprep.subr.bf16.mxu0 0
        %1191 = vmatpush1.bf16.msra.mxu0 0
        %1192 = vmatprep.subr.bf16.mxu0 0
        %1193 = vmatpush1.bf16.msra.mxu0 0
        %1194 = vmatprep.subr.bf16.mxu0 0
        %1195 = vmatpush1.bf16.msra.mxu0 0
        %1196 = vmatprep.subr.bf16.mxu0 0
        %1197 = vmatpush1.bf16.msra.mxu0 0
        %1198 = vmatprep.mubr.bf16.mxu0 0
        %1199 = vmatmul.mubr.bf16.gmra.mrb[0].mxu0 %v1164
        %v1200 = vpop.f32.mrb[0].mxu0
        %v1201 = vadd.f32 %v1150, %v1200
        %v1202 = vpop.f32.mrb[0].mxu0
        %v1203 = vadd.f32 %v1150, %v1202
        %v1204 = vpop.f32.mrb[0].mxu0
        %v1205 = vadd.f32 %v1155, %v1204
        %v1206 = vpop.f32.mrb[0].mxu0
        %v1207 = vadd.f32 %v1155, %v1206
        %1208 = vdwg.mxu0
        %v1209 = vadd.f32 %v1201, %v393
        %v1210 = vadd.f32 %v1203, %v394
        %v1211 = vadd.f32 %v1205, %v395
        %v1212 = vadd.f32 %v1207, %v396
        %1213 = vst [vmem:[%s300] sm:$0xff] %v1209
        %1214 = vst [vmem:[%s300 + $0x8] sm:$0xff] %v1210
        %1215 = vst [vmem:[%s300 + $0x10] sm:$0xff] %v1211
        %1216 = vst [vmem:[%s300 + $0x18] sm:$0xff] %v1212
        %s1217 = sand.u32 %s142, 1
        %s1218 = scalar_lea.sflag [#allocation4], %s1217
        %s1219 = sand.u32 %s142, 1
        %s1220 = smul.addr %s1219, 32
        %s1221 = scalar_lea.vmem [#allocation11], %s1220
        // Predicated region
        $region61: #{tpu_custom_call.1} parent=39 // pred_check
          %p1222 = pneg %p152
        $region62: #{tpu_custom_call.1} parent=39 // pred_check_branch
          %1224 = sbr.rel (%p1222) target = $region64
        $region63: #{tpu_custom_call.1} parent=39 // pred_region
          %s1225 = smul.u32 2, %s24
          %s1227 = ssub.s32 512, 512
          %1228 = vsyncadd %s1218, %s1227
          %s1229 = smul.addr %s1225, 128
          %s1230 = scalar_lea.hbm %s5, %s1229
          %s1231 = sshll.u32 %s1221, 4
          %s1232 = int_to_ptr.vmem [resolvable:$true] %s1231
          %1237 = dma.vmem_to_hbm [thread:$0]  %s1232, 512, %s1230, %s1218, 256, 512, 16
        $region64: #{tpu_custom_call.1} parent=39 // pred_fallthru
          _
      $region40: #{tpu_custom_call.1} parent=5 // pred_fallthru
        _
      %p1238 = scmp.le.s32.totalorder 2, %s19
      // Predicated region
      $region65: #{tpu_custom_call.1} parent=5 // pred_check
        %p1239 = pneg %p1238
      $region66: #{tpu_custom_call.1} parent=5 // pred_check_branch
        %1241 = sbr.rel (%p1239) target = $region68
      $region67: #{tpu_custom_call.1} parent=5 // pred_region
        %s1242 = ssub.s32 %s19, 2
        // Predicated region
        $region69: #{tpu_custom_call.1} parent=67 // pred_check
          %p1243 = pneg %p158
        $region70: #{tpu_custom_call.1} parent=67 // pred_check_branch
          %1245 = sbr.rel (%p1243) target = $region72
        $region71: #{tpu_custom_call.1} parent=67 // pred_region
          %s1246 = sand.u32 %s143, 1
          %s1247 = scalar_lea.sflag [#allocation4], %s1246
          %s1248 = sand.u32 %s143, 1
          %s1249 = smul.addr %s1248, 32
          %s1250 = scalar_lea.vmem [#allocation11], %s1249
          %1251 = dma.done %s1247, 512
        $region72: #{tpu_custom_call.1} parent=67 // pred_fallthru
          _
      $region68: #{tpu_custom_call.1} parent=5 // pred_fallthru
        _
    $region6: #{tpu_custom_call.1} parent=1 // loop_footer
      %s23 = sadd.s32 1, %s19
    $region7: #{tpu_custom_call.1} parent=1 // loop_footer_branch
      %18 = sbr.rel target = $region3
    $region8: #{tpu_custom_call.1} parent=1 // loop_exit
      _
    %1252 = vsyncpa [#allocation3], 1
    %s1253 = scalar_lea.sflag [#allocation3], 1
    %1254 = vsyncpa %s1253, 1
    %1255 = vsyncpa [#allocation6], 1
    %1256 = vsyncpa [#allocation9], 1
    %1257 = vsyncpa [#allocation4], 1
    %s1258 = scalar_lea.sflag [#allocation4], 1
    %1259 = vsyncpa %s1258, 1

</llo_original>
